<compile_context>
chip_gen: v6e
topology: v6e:2x2x1
jax: 0.10.0
libtpu: 0.0.40
codegen_flags: <defaults>
</compile_context>

<pallas_src>
import jax
import jax.numpy as jnp
from jax.experimental import pallas as pl
from jax.experimental.pallas import tpu as pltpu


def _siamese_branch_kernel(x1_ref, x2_ref, w1_ref, b1_ref, w2_ref, b2_ref, o_ref):
    """One siamese branch per grid step.

    x1_ref/x2_ref : (B, K) f32   flattened inputs of the two branches (resident)
    w1_ref        : (K, H) bf16  shared layer-1 weight (resident across steps)
    b1_ref        : (1, H) f32
    w2_ref        : (H, E) bf16  shared layer-2 weight
    b2_ref        : (1, E) f32
    o_ref         : (B, E) f32   output block for branch `pl.program_id(0)`
    """

    def _shared_mlp(x_f32):
        # Cast activations to bf16 in-kernel (free VPU op, hidden under W1 DMA);
        # both matmuls accumulate in f32 on the MXU.
        h = jnp.dot(x_f32.astype(jnp.bfloat16), w1_ref[...],
                    preferred_element_type=jnp.float32)
        h = jnp.maximum(h + b1_ref[...], 0.0)          # bias + ReLU in f32 (VPU)
        out = jnp.dot(h.astype(jnp.bfloat16), w2_ref[...],
                      preferred_element_type=jnp.float32)
        return out + b2_ref[...]

    branch = pl.program_id(0)

    @pl.when(branch == 0)
    def _():
        o_ref[...] = _shared_mlp(x1_ref[...]).astype(o_ref.dtype)

    @pl.when(branch != 0)
    def _():
        o_ref[...] = _shared_mlp(x2_ref[...]).astype(o_ref.dtype)


def prepare_siamese_params(w1, b1, w2, b2):
    """One-time parameter preparation (hoisted off the per-call critical path)."""
    return (
        w1.astype(jnp.bfloat16),
        b1.reshape(1, -1).astype(jnp.float32),
        w2.astype(jnp.bfloat16),
        b2.reshape(1, -1).astype(jnp.float32),
    )


def siamese_forward(x_1, x_2, prepared_params):
    """SiameseNet.forward: shared-weight model applied to both inputs."""
    w1, b1, w2, b2 = prepared_params
    B = x_1.shape[0]
    K, H = w1.shape
    E = w2.shape[1]

    # Flatten is a metadata-only reshape of a contiguous array (no HBM copy);
    # inputs stay f32 — the bf16 cast happens inside the kernel.
    x1_flat = x_1.reshape(B, -1)
    x2_flat = x_2.reshape(B, -1)

    flops = 2 * (2 * B * K * H + 2 * B * H * E)
    bytes_accessed = (2 * B * K * 4          # x1 + x2 (f32)
                      + K * H * 2            # W1 (bf16) — dominant transfer
                      + H * 4 + H * E * 2 + E * 4
                      + 2 * B * E * 4)       # outputs

    out = pl.pallas_call(
        _siamese_branch_kernel,
        out_shape=jax.ShapeDtypeStruct((2, B, E), jnp.float32),
        grid=(2,),  # one siamese branch per step; parallel -> one per TC on v7x
        in_specs=[
            pl.BlockSpec((B, K), lambda i: (0, 0)),   # x1 (VMEM-resident)
            pl.BlockSpec((B, K), lambda i: (0, 0)),   # x2 (VMEM-resident)
            pl.BlockSpec((K, H), lambda i: (0, 0)),   # W1 bf16 (resident, 1 DMA)
            pl.BlockSpec((1, H), lambda i: (0, 0)),   # b1
            pl.BlockSpec((H, E), lambda i: (0, 0)),   # W2 bf16
            pl.BlockSpec((1, E), lambda i: (0, 0)),   # b2
        ],
        out_specs=pl.BlockSpec((None, B, E), lambda i: (i, 0, 0)),
        compiler_params=pltpu.CompilerParams(
            dimension_semantics=("parallel",),
        ),
        cost_estimate=pl.CostEstimate(
            flops=flops, transcendentals=0, bytes_accessed=bytes_accessed),
    )(x1_flat, x2_flat, w1, b1, w2, b2)

    return out[0], out[1]


def _reference_forward(x_1, x_2, params_f32):
    """Pure-JAX reference with the same mixed precision as the kernel."""
    w1, b1, w2, b2 = params_f32

    def f(x):
        xf = x.reshape(x.shape[0], -1)
        h = jnp.dot(xf.astype(jnp.bfloat16), w1.astype(jnp.bfloat16),
                    preferred_element_type=jnp.float32)
        h = jnp.maximum(h + b1.reshape(1, -1), 0.0)
        out = jnp.dot(h.astype(jnp.bfloat16), w2.astype(jnp.bfloat16),
                      preferred_element_type=jnp.float32)
        return out + b2.reshape(1, -1)

    return f(x_1), f(x_2)


if __name__ == "__main__":
    key = jax.random.PRNGKey(0)
    k_x1, k_x2, k_w1, k_b1, k_w2, k_b2 = jax.random.split(key, 6)

    # Small NCHW inputs consistent with a conv-style model: (N=2, C=4, H=16, W=16)
    B, C, Hs, Ws = 2, 4, 16, 16
    K = C * Hs * Ws          # 1024 flattened features
    HID, EMB = 128, 32       # hidden width / embedding size

    x_1 = jax.random.normal(k_x1, (B, C, Hs, Ws), dtype=jnp.float32)
    x_2 = jax.random.normal(k_x2, (B, C, Hs, Ws), dtype=jnp.float32)

    # Deterministic shared parameters of the inner model (f32 "master" copy).
    w1 = jax.random.normal(k_w1, (K, HID), dtype=jnp.float32) * 0.02
    b1 = jax.random.normal(k_b1, (HID,), dtype=jnp.float32) * 0.1
    w2 = jax.random.normal(k_w2, (HID, EMB), dtype=jnp.float32) * 0.05
    b2 = jax.random.normal(k_b2, (EMB,), dtype=jnp.float32) * 0.1

    # One-time prep (cast/reshape) — not on the per-forward critical path.
    prepared = prepare_siamese_params(w1, b1, w2, b2)

    fwd = jax.jit(siamese_forward)
    out_1, out_2 = jax.block_until_ready(fwd(x_1, x_2, prepared))

    ref_1, ref_2 = _reference_forward(x_1, x_2, (w1, b1, w2, b2))
    assert out_1.shape == (B, EMB) and out_2.shape == (B, EMB)
    assert jnp.allclose(out_1, ref_1, atol=2e-3, rtol=2e-3)
    assert jnp.allclose(out_2, ref_2, atol=2e-3, rtol=2e-3)

    print("KERNEL_OK")
</pallas_src>

<mosaic_0001>
module attributes {stable_mosaic.version = 11 : i64} {
  func.func @_siamese_branch_kernel(%arg0: i32, %arg1: memref<2x1024xf32, #tpu.memory_space<vmem>>, %arg2: memref<2x1024xf32, #tpu.memory_space<vmem>>, %arg3: memref<1024x128xbf16, #tpu.memory_space<vmem>>, %arg4: memref<1x128xf32, #tpu.memory_space<vmem>>, %arg5: memref<128x32xbf16, #tpu.memory_space<vmem>>, %arg6: memref<1x32xf32, #tpu.memory_space<vmem>>, %arg7: memref<1x2x32xf32, #tpu.memory_space<vmem>>) attributes {dimension_semantics = [#tpu.dimension_semantics<parallel>], iteration_bounds = array<i64: 2>, scalar_prefetch = 0 : i64, scratch_operands = 0 : i64, tpu.core_type = #tpu.core_type<tc>, window_params = [{pipeline_mode = #tpu.pipeline_mode<synchronous>, transform_indices = @transform_0, window_bounds = array<i64: 2, 1024>}, {pipeline_mode = #tpu.pipeline_mode<synchronous>, transform_indices = @transform_1, window_bounds = array<i64: 2, 1024>}, {pipeline_mode = #tpu.pipeline_mode<synchronous>, transform_indices = @transform_2, window_bounds = array<i64: 1024, 128>}, {pipeline_mode = #tpu.pipeline_mode<synchronous>, transform_indices = @transform_3, window_bounds = array<i64: 1, 128>}, {pipeline_mode = #tpu.pipeline_mode<synchronous>, transform_indices = @transform_4, window_bounds = array<i64: 128, 32>}, {pipeline_mode = #tpu.pipeline_mode<synchronous>, transform_indices = @transform_5, window_bounds = array<i64: 1, 32>}, {transform_indices = @transform_6, window_bounds = array<i64: 1, 2, 32>}]} {
    %c0_i32 = arith.constant 0 : i32
    %0 = arith.cmpi eq, %arg0, %c0_i32 : i32
    %1 = arith.extui %0 : i1 to i32
    %c0_i32_0 = arith.constant 0 : i32
    %2 = arith.cmpi ne, %1, %c0_i32_0 : i32
    scf.if %2 {
      %c0 = arith.constant 0 : index
      %c0_3 = arith.constant 0 : index
      %6 = vector.load %arg1[%c0, %c0_3] : memref<2x1024xf32, #tpu.memory_space<vmem>>, vector<2x1024xf32>
      %7 = arith.truncf %6 : vector<2x1024xf32> to vector<2x1024xbf16>
      %c0_4 = arith.constant 0 : index
      %c0_5 = arith.constant 0 : index
      %8 = vector.load %arg3[%c0_4, %c0_5] : memref<1024x128xbf16, #tpu.memory_space<vmem>>, vector<1024x128xbf16>
      %cst = arith.constant dense<0.000000e+00> : vector<2x128xf32>
      %9 = tpu.matmul %7, %8, %cst {dimension_numbers = #tpu.dot_dimension_numbers<[1], [0], [0], [1], [0, 0, 1, 1], [], []>} : vector<2x1024xbf16>, vector<1024x128xbf16>, vector<2x128xf32> -> vector<2x128xf32>
      %c0_6 = arith.constant 0 : index
      %c0_7 = arith.constant 0 : index
      %10 = vector.load %arg4[%c0_6, %c0_7] : memref<1x128xf32, #tpu.memory_space<vmem>>, vector<1x128xf32>
      %11 = vector.broadcast %10 : vector<1x128xf32> to vector<2x128xf32>
      %12 = arith.addf %9, %11 : vector<2x128xf32>
      %cst_8 = arith.constant 0.000000e+00 : f32
      %13 = vector.broadcast %cst_8 : f32 to vector<2x128xf32>
      %14 = arith.maximumf %12, %13 : vector<2x128xf32>
      %15 = arith.truncf %14 : vector<2x128xf32> to vector<2x128xbf16>
      %c0_9 = arith.constant 0 : index
      %c0_10 = arith.constant 0 : index
      %16 = vector.load %arg5[%c0_9, %c0_10] : memref<128x32xbf16, #tpu.memory_space<vmem>>, vector<128x32xbf16>
      %cst_11 = arith.constant dense<0.000000e+00> : vector<2x32xf32>
      %17 = tpu.matmul %15, %16, %cst_11 {dimension_numbers = #tpu.dot_dimension_numbers<[1], [0], [0], [1], [0, 0, 1, 1], [], []>} : vector<2x128xbf16>, vector<128x32xbf16>, vector<2x32xf32> -> vector<2x32xf32>
      %c0_12 = arith.constant 0 : index
      %c0_13 = arith.constant 0 : index
      %18 = vector.load %arg6[%c0_12, %c0_13] : memref<1x32xf32, #tpu.memory_space<vmem>>, vector<1x32xf32>
      %19 = vector.broadcast %18 : vector<1x32xf32> to vector<2x32xf32>
      %20 = arith.addf %17, %19 : vector<2x32xf32>
      %c0_14 = arith.constant 0 : index
      %c0_15 = arith.constant 0 : index
      %c0_16 = arith.constant 0 : index
      %21 = vector.load %arg7[%c0_14, %c0_15, %c0_16] : memref<1x2x32xf32, #tpu.memory_space<vmem>>, vector<1x2x32xf32>
      %22 = vector.shape_cast %21 : vector<1x2x32xf32> to vector<2x32xf32>
      %23 = vector.shape_cast %20 : vector<2x32xf32> to vector<1x2x32xf32>
      tpu.vector_store %arg7[%c0_14, %c0_15, %c0_16], %23 {strides = array<i32>} : memref<1x2x32xf32, #tpu.memory_space<vmem>>, vector<1x2x32xf32>,
    } else {
    }
    %c0_i32_1 = arith.constant 0 : i32
    %3 = arith.cmpi ne, %arg0, %c0_i32_1 : i32
    %4 = arith.extui %3 : i1 to i32
    %c0_i32_2 = arith.constant 0 : i32
    %5 = arith.cmpi ne, %4, %c0_i32_2 : i32
    scf.if %5 {
      %c0 = arith.constant 0 : index
      %c0_3 = arith.constant 0 : index
      %6 = vector.load %arg2[%c0, %c0_3] : memref<2x1024xf32, #tpu.memory_space<vmem>>, vector<2x1024xf32>
      %7 = arith.truncf %6 : vector<2x1024xf32> to vector<2x1024xbf16>
      %c0_4 = arith.constant 0 : index
      %c0_5 = arith.constant 0 : index
      %8 = vector.load %arg3[%c0_4, %c0_5] : memref<1024x128xbf16, #tpu.memory_space<vmem>>, vector<1024x128xbf16>
      %cst = arith.constant dense<0.000000e+00> : vector<2x128xf32>
      %9 = tpu.matmul %7, %8, %cst {dimension_numbers = #tpu.dot_dimension_numbers<[1], [0], [0], [1], [0, 0, 1, 1], [], []>} : vector<2x1024xbf16>, vector<1024x128xbf16>, vector<2x128xf32> -> vector<2x128xf32>
      %c0_6 = arith.constant 0 : index
      %c0_7 = arith.constant 0 : index
      %10 = vector.load %arg4[%c0_6, %c0_7] : memref<1x128xf32, #tpu.memory_space<vmem>>, vector<1x128xf32>
      %11 = vector.broadcast %10 : vector<1x128xf32> to vector<2x128xf32>
      %12 = arith.addf %9, %11 : vector<2x128xf32>
      %cst_8 = arith.constant 0.000000e+00 : f32
      %13 = vector.broadcast %cst_8 : f32 to vector<2x128xf32>
      %14 = arith.maximumf %12, %13 : vector<2x128xf32>
      %15 = arith.truncf %14 : vector<2x128xf32> to vector<2x128xbf16>
      %c0_9 = arith.constant 0 : index
      %c0_10 = arith.constant 0 : index
      %16 = vector.load %arg5[%c0_9, %c0_10] : memref<128x32xbf16, #tpu.memory_space<vmem>>, vector<128x32xbf16>
      %cst_11 = arith.constant dense<0.000000e+00> : vector<2x32xf32>
      %17 = tpu.matmul %15, %16, %cst_11 {dimension_numbers = #tpu.dot_dimension_numbers<[1], [0], [0], [1], [0, 0, 1, 1], [], []>} : vector<2x128xbf16>, vector<128x32xbf16>, vector<2x32xf32> -> vector<2x32xf32>
      %c0_12 = arith.constant 0 : index
      %c0_13 = arith.constant 0 : index
      %18 = vector.load %arg6[%c0_12, %c0_13] : memref<1x32xf32, #tpu.memory_space<vmem>>, vector<1x32xf32>
      %19 = vector.broadcast %18 : vector<1x32xf32> to vector<2x32xf32>
      %20 = arith.addf %17, %19 : vector<2x32xf32>
      %c0_14 = arith.constant 0 : index
      %c0_15 = arith.constant 0 : index
      %c0_16 = arith.constant 0 : index
      %21 = vector.load %arg7[%c0_14, %c0_15, %c0_16] : memref<1x2x32xf32, #tpu.memory_space<vmem>>, vector<1x2x32xf32>
      %22 = vector.shape_cast %21 : vector<1x2x32xf32> to vector<2x32xf32>
      %23 = vector.shape_cast %20 : vector<2x32xf32> to vector<1x2x32xf32>
      tpu.vector_store %arg7[%c0_14, %c0_15, %c0_16], %23 {strides = array<i32>} : memref<1x2x32xf32, #tpu.memory_space<vmem>>, vector<1x2x32xf32>,
    } else {
    }
    return
  }
  func.func @transform_0(%arg0: i32) -> (i32, i32) {
    %c0_i32 = arith.constant 0 : i32
    %c0_i32_0 = arith.constant 0 : i32
    %c0_i32_1 = arith.constant 0 : i32
    return %c0_i32, %c0_i32_0 : i32, i32
  }
  func.func @transform_1(%arg0: i32) -> (i32, i32) {
    %c0_i32 = arith.constant 0 : i32
    %c0_i32_0 = arith.constant 0 : i32
    %c0_i32_1 = arith.constant 0 : i32
    return %c0_i32, %c0_i32_0 : i32, i32
  }
  func.func @transform_2(%arg0: i32) -> (i32, i32) {
    %c0_i32 = arith.constant 0 : i32
    %c0_i32_0 = arith.constant 0 : i32
    %c0_i32_1 = arith.constant 0 : i32
    return %c0_i32, %c0_i32_0 : i32, i32
  }
  func.func @transform_3(%arg0: i32) -> (i32, i32) {
    %c0_i32 = arith.constant 0 : i32
    %c0_i32_0 = arith.constant 0 : i32
    %c0_i32_1 = arith.constant 0 : i32
    return %c0_i32, %c0_i32_0 : i32, i32
  }
  func.func @transform_4(%arg0: i32) -> (i32, i32) {
    %c0_i32 = arith.constant 0 : i32
    %c0_i32_0 = arith.constant 0 : i32
    %c0_i32_1 = arith.constant 0 : i32
    return %c0_i32, %c0_i32_0 : i32, i32
  }
  func.func @transform_5(%arg0: i32) -> (i32, i32) {
    %c0_i32 = arith.constant 0 : i32
    %c0_i32_0 = arith.constant 0 : i32
    %c0_i32_1 = arith.constant 0 : i32
    return %c0_i32, %c0_i32_0 : i32, i32
  }
  func.func @transform_6(%arg0: i32) -> (i32, i32, i32) {
    %c0_i32 = arith.constant 0 : i32
    %c0_i32_0 = arith.constant 0 : i32
    %c0_i32_1 = arith.constant 0 : i32
    return %arg0, %c0_i32, %c0_i32_0 : i32, i32, i32
  }
}

</mosaic_0001>

<llo_original>
// kernel: siamese_forward.1
$region0: #{siamese_forward.1}
  #allocation0 [shape = 'u32[]', space=smem, size = 0x4, offset = 0x4, fixed_abs, tag = 'smem constant byte address 0x4 - core index']
  #allocation1 [shape = 'u32[144,128]{1,0:T(1,128)}', space=vmem, size = 0x12000, scoped, tag = 'internal scratch']
  %s0 = inlined_call_operand.vmem [shape: f32[2,1024], index: 0, kind: input, shape index: {}]
  %s1 = inlined_call_operand.vmem [shape: f32[2,1024], index: 1, kind: input, shape index: {}]
  %s2 = inlined_call_operand.hbm [shape: bf16[1024,128], index: 2, kind: input, shape index: {}]
  %s3 = inlined_call_operand.vmem [shape: f32[1,128], index: 3, kind: input, shape index: {}]
  %s4 = inlined_call_operand.vmem [shape: bf16[128,32], index: 4, kind: input, shape index: {}]
  %s5 = inlined_call_operand.vmem [shape: f32[1,32], index: 5, kind: input, shape index: {}]
  %s6 = inlined_call_operand.vmem [shape: f32[2,2,32], index: 6, kind: output, shape index: {}]
  %s7 = sld [smem:[#allocation0]]
  $region69: #{siamese_forward.1} parent=0
    _
  %s9 = ssub.s32 1, %s7
  %s10 = scalar_select 0, %s9, %s7
  $region1: #{siamese_forward.1} parent=0
    #allocation2 [shape = 'u8[262144]{0}', space=vmem, size = 0x40000, scoped, tag = 'input window, operand 2, single buffered']
    #allocation3 [shape = 's32[2]{0}', space=sflag, size = 0x8, scoped, tag = 'scoped memory for siamese_forward.1']
    %11 = vsyncpa [#allocation3], 0
    loop: start=0, step=1, limit=4
    $region2: #{siamese_forward.1} parent=1 // loop_pre_header
      _
    $region3: #{siamese_forward.1} parent=1 // loop_header
      %s13 = sphi 0, %s17
      %p14 = scmp.ge.s32.totalorder %s13, 4
      %s21 = sphi 0, %s21
      %s23 = sphi 0, %s21
      %s24 = sphi 0, %s23
      %s38 = sphi 0, %s24
      %s42 = sphi 0, %s42
      %s44 = sphi 0, %s42
      %s45 = sphi 0, %s44
      %s59 = sphi 0, %s45
      %s63 = sphi 0, %s63
      %s65 = sphi 0, %s63
      %s66 = sphi 0, %s65
      %s80 = sphi 0, %s66
      %s84 = sphi 0, %s84
      %s86 = sphi 0, %s84
      %s87 = sphi 0, %s86
      %s101 = sphi 0, %s87
      %s105 = sphi 0, %s105
      %s107 = sphi 0, %s105
      %s108 = sphi 0, %s107
      %s122 = sphi 0, %s108
      %s126 = sphi 0, %s126
      %s128 = sphi 0, %s126
      %s129 = sphi 0, %s128
      %s143 = sphi 0, %s129
      %s149 = sphi 0, %s151
      %s152 = sphi 0, %s149
      %s153 = sphi 0, %s152
      %s169 = sphi 0, %s153
    $region4: #{siamese_forward.1} parent=1 // loop_header_branch
      %16 = sbr.rel (%p14) target = $region8
    $region5: #{siamese_forward.1} parent=1 // loop_body
      %s18 = ssub.s32 %s13, 1
      %s19 = ssub.s32 %s13, 2
      %s20 = sadd.s32 %s13, 1
      %s22 = sadd.s32 %s21, 1
      %p25 = scmp.eq.s32.totalorder %s13, 1
      %p26 = scmp.ne.s32.totalorder %s21, %s23
      %p27 = scmp.eq.s32.totalorder %s13, 0
      %p28 = por %p26, %p27
      %p29 = scmp.ne.s32.totalorder %s21, %s23
      %p30 = scmp.eq.s32.totalorder %s18, 1
      %p31 = por %p29, %p30
      %p32 = scmp.ne.s32.totalorder %s23, %s24
      %p33 = scmp.eq.s32.totalorder %s18, 0
      %p34 = por %p32, %p33
      %p35 = scmp.ne.s32.totalorder %s23, %s24
      %p36 = scmp.eq.s32.totalorder %s19, 1
      %p37 = por %p35, %p36
      %p39 = scmp.ne.s32.totalorder %s24, %s38
      %p40 = scmp.eq.s32.totalorder %s19, 0
      %p41 = por %p39, %p40
      %s43 = sadd.s32 %s42, 1
      %p46 = scmp.eq.s32.totalorder %s13, 1
      %p47 = scmp.ne.s32.totalorder %s42, %s44
      %p48 = scmp.eq.s32.totalorder %s13, 0
      %p49 = por %p47, %p48
      %p50 = scmp.ne.s32.totalorder %s42, %s44
      %p51 = scmp.eq.s32.totalorder %s18, 1
      %p52 = por %p50, %p51
      %p53 = scmp.ne.s32.totalorder %s44, %s45
      %p54 = scmp.eq.s32.totalorder %s18, 0
      %p55 = por %p53, %p54
      %p56 = scmp.ne.s32.totalorder %s44, %s45
      %p57 = scmp.eq.s32.totalorder %s19, 1
      %p58 = por %p56, %p57
      %p60 = scmp.ne.s32.totalorder %s45, %s59
      %p61 = scmp.eq.s32.totalorder %s19, 0
      %p62 = por %p60, %p61
      %s64 = sadd.s32 %s63, 1
      %p67 = scmp.eq.s32.totalorder %s13, 1
      %p68 = scmp.ne.s32.totalorder %s63, %s65
      %p69 = scmp.eq.s32.totalorder %s13, 0
      %p70 = por %p68, %p69
      %p71 = scmp.ne.s32.totalorder %s63, %s65
      %p72 = scmp.eq.s32.totalorder %s18, 1
      %p73 = por %p71, %p72
      %p74 = scmp.ne.s32.totalorder %s65, %s66
      %p75 = scmp.eq.s32.totalorder %s18, 0
      %p76 = por %p74, %p75
      %p77 = scmp.ne.s32.totalorder %s65, %s66
      %p78 = scmp.eq.s32.totalorder %s19, 1
      %p79 = por %p77, %p78
      %p81 = scmp.ne.s32.totalorder %s66, %s80
      %p82 = scmp.eq.s32.totalorder %s19, 0
      %p83 = por %p81, %p82
      %s85 = sadd.s32 %s84, 1
      %p88 = scmp.eq.s32.totalorder %s13, 1
      %p89 = scmp.ne.s32.totalorder %s84, %s86
      %p90 = scmp.eq.s32.totalorder %s13, 0
      %p91 = por %p89, %p90
      %p92 = scmp.ne.s32.totalorder %s84, %s86
      %p93 = scmp.eq.s32.totalorder %s18, 1
      %p94 = por %p92, %p93
      %p95 = scmp.ne.s32.totalorder %s86, %s87
      %p96 = scmp.eq.s32.totalorder %s18, 0
      %p97 = por %p95, %p96
      %p98 = scmp.ne.s32.totalorder %s86, %s87
      %p99 = scmp.eq.s32.totalorder %s19, 1
      %p100 = por %p98, %p99
      %p102 = scmp.ne.s32.totalorder %s87, %s101
      %p103 = scmp.eq.s32.totalorder %s19, 0
      %p104 = por %p102, %p103
      %s106 = sadd.s32 %s105, 1
      %p109 = scmp.eq.s32.totalorder %s13, 1
      %p110 = scmp.ne.s32.totalorder %s105, %s107
      %p111 = scmp.eq.s32.totalorder %s13, 0
      %p112 = por %p110, %p111
      %p113 = scmp.ne.s32.totalorder %s105, %s107
      %p114 = scmp.eq.s32.totalorder %s18, 1
      %p115 = por %p113, %p114
      %p116 = scmp.ne.s32.totalorder %s107, %s108
      %p117 = scmp.eq.s32.totalorder %s18, 0
      %p118 = por %p116, %p117
      %p119 = scmp.ne.s32.totalorder %s107, %s108
      %p120 = scmp.eq.s32.totalorder %s19, 1
      %p121 = por %p119, %p120
      %p123 = scmp.ne.s32.totalorder %s108, %s122
      %p124 = scmp.eq.s32.totalorder %s19, 0
      %p125 = por %p123, %p124
      %s127 = sadd.s32 %s126, 1
      %p130 = scmp.eq.s32.totalorder %s13, 1
      %p131 = scmp.ne.s32.totalorder %s126, %s128
      %p132 = scmp.eq.s32.totalorder %s13, 0
      %p133 = por %p131, %p132
      %p134 = scmp.ne.s32.totalorder %s126, %s128
      %p135 = scmp.eq.s32.totalorder %s18, 1
      %p136 = por %p134, %p135
      %p137 = scmp.ne.s32.totalorder %s128, %s129
      %p138 = scmp.eq.s32.totalorder %s18, 0
      %p139 = por %p137, %p138
      %p140 = scmp.ne.s32.totalorder %s128, %s129
      %p141 = scmp.eq.s32.totalorder %s19, 1
      %p142 = por %p140, %p141
      %p144 = scmp.ne.s32.totalorder %s129, %s143
      %p145 = scmp.eq.s32.totalorder %s19, 0
      %p146 = por %p144, %p145
      %s147 = ssub.s32 %s13, %s20
      %p148 = scmp.eq.s32.totalorder %s147, 0
      %s150 = sadd.s32 %s149, 1
      %s151 = scalar_select %p148, %s149, %s150
      %p154 = pneg %p148
      %p155 = scmp.eq.s32.totalorder %s13, 1
      %p156 = por %p154, %p155
      %p157 = scmp.ne.s32.totalorder %s149, %s152
      %p158 = scmp.eq.s32.totalorder %s13, 0
      %p159 = por %p157, %p158
      %p160 = scmp.ne.s32.totalorder %s149, %s152
      %p161 = scmp.eq.s32.totalorder %s18, 1
      %p162 = por %p160, %p161
      %p163 = scmp.ne.s32.totalorder %s152, %s153
      %p164 = scmp.eq.s32.totalorder %s18, 0
      %p165 = por %p163, %p164
      %p166 = scmp.ne.s32.totalorder %s152, %s153
      %p167 = scmp.eq.s32.totalorder %s19, 1
      %p168 = por %p166, %p167
      %p170 = scmp.ne.s32.totalorder %s153, %s169
      %p171 = scmp.eq.s32.totalorder %s19, 0
      %p172 = por %p170, %p171
      %p173 = scmp.le.s32.totalorder 1, %s13
      %p174 = scmp.lt.s32.totalorder %s13, 3
      %p175 = pnand %p173, %p174
      %p176 = pneg %p175
      // Predicated region
      $region9: #{siamese_forward.1} parent=5 // pred_check
        _
      $region10: #{siamese_forward.1} parent=5 // pred_check_branch
        %178 = sbr.rel (%p175) target = $region12
      $region11: #{siamese_forward.1} parent=5 // pred_region
        %s179 = ssub.s32 %s13, 1
        // Predicated region
        $region13: #{siamese_forward.1} parent=11 // pred_check
          %p180 = pneg %p34
        $region14: #{siamese_forward.1} parent=11 // pred_check_branch
          %182 = sbr.rel (%p180) target = $region16
        $region15: #{siamese_forward.1} parent=11 // pred_region
          _
        $region16: #{siamese_forward.1} parent=11 // pred_fallthru
          _
        // Predicated region
        $region17: #{siamese_forward.1} parent=11 // pred_check
          %p183 = pneg %p55
        $region18: #{siamese_forward.1} parent=11 // pred_check_branch
          %185 = sbr.rel (%p183) target = $region20
        $region19: #{siamese_forward.1} parent=11 // pred_region
          _
        $region20: #{siamese_forward.1} parent=11 // pred_fallthru
          _
        // Predicated region
        $region21: #{siamese_forward.1} parent=11 // pred_check
          %p186 = pneg %p76
        $region22: #{siamese_forward.1} parent=11 // pred_check_branch
          %188 = sbr.rel (%p186) target = $region24
        $region23: #{siamese_forward.1} parent=11 // pred_region
          %s190 = ssub.s32 8192, 8192
          %191 = vsyncadd [#allocation3], %s190
          %s192 = sshll.u32 [#allocation2], 4
          %s193 = int_to_ptr.vmem [resolvable:$true] %s192
          %198 = dma.hbm_to_vmem [thread:$0]  %s2, 8192, %s193, [#allocation3], 64, 64, 4
        $region24: #{siamese_forward.1} parent=11 // pred_fallthru
          _
        // Predicated region
        $region25: #{siamese_forward.1} parent=11 // pred_check
          %p199 = pneg %p97
        $region26: #{siamese_forward.1} parent=11 // pred_check_branch
          %201 = sbr.rel (%p199) target = $region28
        $region27: #{siamese_forward.1} parent=11 // pred_region
          _
        $region28: #{siamese_forward.1} parent=11 // pred_fallthru
          _
        // Predicated region
        $region29: #{siamese_forward.1} parent=11 // pred_check
          %p202 = pneg %p118
        $region30: #{siamese_forward.1} parent=11 // pred_check_branch
          %204 = sbr.rel (%p202) target = $region32
        $region31: #{siamese_forward.1} parent=11 // pred_region
          _
        $region32: #{siamese_forward.1} parent=11 // pred_fallthru
          _
        // Predicated region
        $region33: #{siamese_forward.1} parent=11 // pred_check
          %p205 = pneg %p139
        $region34: #{siamese_forward.1} parent=11 // pred_check_branch
          %207 = sbr.rel (%p205) target = $region36
        $region35: #{siamese_forward.1} parent=11 // pred_region
          _
        $region36: #{siamese_forward.1} parent=11 // pred_fallthru
          _
      $region12: #{siamese_forward.1} parent=5 // pred_fallthru
        _
      %p208 = scmp.lt.s32.totalorder %s13, 2
      // Predicated region
      $region37: #{siamese_forward.1} parent=5 // pred_check
        %p209 = pneg %p208
      $region38: #{siamese_forward.1} parent=5 // pred_check_branch
        %211 = sbr.rel (%p209) target = $region40
      $region39: #{siamese_forward.1} parent=5 // pred_region
        _
      $region40: #{siamese_forward.1} parent=5 // pred_fallthru
        _
      %p212 = scmp.le.s32.totalorder 1, %s13
      %p213 = scmp.lt.s32.totalorder %s13, 3
      %p214 = pnand %p212, %p213
      %p215 = pneg %p214
      // Predicated region
      $region41: #{siamese_forward.1} parent=5 // pred_check
        _
      $region42: #{siamese_forward.1} parent=5 // pred_check_branch
        %217 = sbr.rel (%p214) target = $region44
      $region43: #{siamese_forward.1} parent=5 // pred_region
        %s218 = ssub.s32 %s13, 1
        // Predicated region
        $region45: #{siamese_forward.1} parent=43 // pred_check
          %p219 = pneg %p76
        $region46: #{siamese_forward.1} parent=43 // pred_check_branch
          %221 = sbr.rel (%p219) target = $region48
        $region47: #{siamese_forward.1} parent=43 // pred_region
          %222 = dma.done [#allocation3], 8192
        $region48: #{siamese_forward.1} parent=43 // pred_fallthru
          _
        %p223 = pneg %p34
        %p224 = pneg %p31
        %p225 = pneg %p55
        %p226 = pneg %p52
        %p227 = pneg %p76
        %p228 = pneg %p73
        %p229 = pneg %p97
        %p230 = pneg %p94
        %p231 = pneg %p118
        %p232 = pneg %p115
        %p233 = pneg %p139
        %p234 = pneg %p136
        %p235 = pneg %p165
        %p236 = pneg %p162
        %p237 = scmp.lt.s32.totalorder %s18, 1
        %s238 = scalar_select %p237, %s18, 1
        %s239 = smul.addr %s238, 2
        %s240 = scalar_lea.vmem %s6, %s239
        %p241 = scmp.lt.s32.totalorder %s18, 1
        %s242 = scalar_select %p241, %s18, 1
        %s243 = smul.addr %s242, 2
        %s244 = scalar_lea.vmem %s6, %s243
        %p246 = scmp.eq.s32.totalorder %s18, 0
        // Predicated region
        $region49: #{siamese_forward.1} parent=43 // pred_check
          %p247 = pneg %p246
        $region50: #{siamese_forward.1} parent=43 // pred_check_branch
          %249 = sbr.rel (%p247) target = $region52
        $region51: #{siamese_forward.1} parent=43 // pred_region
          %v250 = vld [vmem:[%s0] sm:$0xff]
          %v251 = vld [vmem:[%s0 + $0x8] sm:$0xff]
          %v254 = vcombine.high %v250, %v250
          %v256 = vunpack.c.l.s4 1983009808
          %v257 = vunpack.c.0.s8 %v256
          %v258 = vlaneseq
          %v259 = vshrl.u32 %v258, 7
          %v260 = vsub.s32 %v257, %v259
          %v261 = vrot.slane %v250, %v260
          %v263 = vunpack.c.l.s4 1983009808
          %v264 = vunpack.c.0.s8 %v263
          %v265 = vlaneseq
          %v266 = vshrl.u32 %v265, 7
          %v267 = vsub.s32 %v264, %v266
          %v268 = vrot.slane %v254, %v267
          %v269 = vcombine.high %v261, %v261
          %v270 = vcombine.high %v268, %v268
          %v271 = vcombine.high %v251, %v251
          %v273 = vunpack.c.l.s4 1983009808
          %v274 = vunpack.c.0.s8 %v273
          %v275 = vlaneseq
          %v276 = vshrl.u32 %v275, 7
          %v277 = vsub.s32 %v274, %v276
          %v278 = vrot.slane %v251, %v277
          %v280 = vunpack.c.l.s4 1983009808
          %v281 = vunpack.c.0.s8 %v280
          %v282 = vlaneseq
          %v283 = vshrl.u32 %v282, 7
          %v284 = vsub.s32 %v281, %v283
          %v285 = vrot.slane %v271, %v284
          %v286 = vcombine.high %v278, %v278
          %v287 = vcombine.high %v285, %v285
          %v296 = vpack.c.bf16 %v261, %v261
          %v297 = vpack.c.bf16 %v269, %v269
          %v298 = vpack.c.bf16 %v268, %v268
          %v299 = vpack.c.bf16 %v270, %v270
          %v300 = vpack.c.bf16 %v278, %v278
          %v301 = vpack.c.bf16 %v286, %v286
          %v302 = vpack.c.bf16 %v285, %v285
          %v303 = vpack.c.bf16 %v287, %v287
          %v304 = vld [vmem:[#allocation2] sm:$0xf]
          %v305 = vld [vmem:[#allocation2 + $0x4] sm:$0xf]
          %v306 = vld [vmem:[#allocation2 + $0x8] sm:$0xf]
          %v307 = vld [vmem:[#allocation2 + $0xc] sm:$0xf]
          %v308 = vld [vmem:[#allocation2 + $0x10] sm:$0xf]
          %v309 = vld [vmem:[#allocation2 + $0x14] sm:$0xf]
          %v310 = vld [vmem:[#allocation2 + $0x18] sm:$0xf]
          %v311 = vld [vmem:[#allocation2 + $0x1c] sm:$0xf]
          %v312 = vld [vmem:[#allocation2 + $0x20] sm:$0xf]
          %v313 = vld [vmem:[#allocation2 + $0x24] sm:$0xf]
          %v314 = vld [vmem:[#allocation2 + $0x28] sm:$0xf]
          %v315 = vld [vmem:[#allocation2 + $0x2c] sm:$0xf]
          %v316 = vld [vmem:[#allocation2 + $0x30] sm:$0xf]
          %v317 = vld [vmem:[#allocation2 + $0x34] sm:$0xf]
          %v318 = vld [vmem:[#allocation2 + $0x38] sm:$0xf]
          %v319 = vld [vmem:[#allocation2 + $0x3c] sm:$0xf]
          %v320 = vld [vmem:[#allocation2 + $0x40] sm:$0xf]
          %v321 = vld [vmem:[#allocation2 + $0x44] sm:$0xf]
          %v322 = vld [vmem:[#allocation2 + $0x48] sm:$0xf]
          %v323 = vld [vmem:[#allocation2 + $0x4c] sm:$0xf]
          %v324 = vld [vmem:[#allocation2 + $0x50] sm:$0xf]
          %v325 = vld [vmem:[#allocation2 + $0x54] sm:$0xf]
          %v326 = vld [vmem:[#allocation2 + $0x58] sm:$0xf]
          %v327 = vld [vmem:[#allocation2 + $0x5c] sm:$0xf]
          %v328 = vld [vmem:[#allocation2 + $0x60] sm:$0xf]
          %v329 = vld [vmem:[#allocation2 + $0x64] sm:$0xf]
          %v330 = vld [vmem:[#allocation2 + $0x68] sm:$0xf]
          %v331 = vld [vmem:[#allocation2 + $0x6c] sm:$0xf]
          %v332 = vld [vmem:[#allocation2 + $0x70] sm:$0xf]
          %v333 = vld [vmem:[#allocation2 + $0x74] sm:$0xf]
          %v334 = vld [vmem:[#allocation2 + $0x78] sm:$0xf]
          %v335 = vld [vmem:[#allocation2 + $0x7c] sm:$0xf]
          %v336 = vld [vmem:[#allocation2 + $0x80] sm:$0xf]
          %v337 = vld [vmem:[#allocation2 + $0x84] sm:$0xf]
          %v338 = vld [vmem:[#allocation2 + $0x88] sm:$0xf]
          %v339 = vld [vmem:[#allocation2 + $0x8c] sm:$0xf]
          %v340 = vld [vmem:[#allocation2 + $0x90] sm:$0xf]
          %v341 = vld [vmem:[#allocation2 + $0x94] sm:$0xf]
          %v342 = vld [vmem:[#allocation2 + $0x98] sm:$0xf]
          %v343 = vld [vmem:[#allocation2 + $0x9c] sm:$0xf]
          %v344 = vld [vmem:[#allocation2 + $0xa0] sm:$0xf]
          %v345 = vld [vmem:[#allocation2 + $0xa4] sm:$0xf]
          %v346 = vld [vmem:[#allocation2 + $0xa8] sm:$0xf]
          %v347 = vld [vmem:[#allocation2 + $0xac] sm:$0xf]
          %v348 = vld [vmem:[#allocation2 + $0xb0] sm:$0xf]
          %v349 = vld [vmem:[#allocation2 + $0xb4] sm:$0xf]
          %v350 = vld [vmem:[#allocation2 + $0xb8] sm:$0xf]
          %v351 = vld [vmem:[#allocation2 + $0xbc] sm:$0xf]
          %v352 = vld [vmem:[#allocation2 + $0xc0] sm:$0xf]
          %v353 = vld [vmem:[#allocation2 + $0xc4] sm:$0xf]
          %v354 = vld [vmem:[#allocation2 + $0xc8] sm:$0xf]
          %v355 = vld [vmem:[#allocation2 + $0xcc] sm:$0xf]
          %v356 = vld [vmem:[#allocation2 + $0xd0] sm:$0xf]
          %v357 = vld [vmem:[#allocation2 + $0xd4] sm:$0xf]
          %v358 = vld [vmem:[#allocation2 + $0xd8] sm:$0xf]
          %v359 = vld [vmem:[#allocation2 + $0xdc] sm:$0xf]
          %v360 = vld [vmem:[#allocation2 + $0xe0] sm:$0xf]
          %v361 = vld [vmem:[#allocation2 + $0xe4] sm:$0xf]
          %v362 = vld [vmem:[#allocation2 + $0xe8] sm:$0xf]
          %v363 = vld [vmem:[#allocation2 + $0xec] sm:$0xf]
          %v364 = vld [vmem:[#allocation2 + $0xf0] sm:$0xf]
          %v365 = vld [vmem:[#allocation2 + $0xf4] sm:$0xf]
          %v366 = vld [vmem:[#allocation2 + $0xf8] sm:$0xf]
          %v367 = vld [vmem:[#allocation2 + $0xfc] sm:$0xf]
          %v368 = vld [vmem:[#allocation2 + $0x100] sm:$0xf]
          %v369 = vld [vmem:[#allocation2 + $0x104] sm:$0xf]
          %v370 = vld [vmem:[#allocation2 + $0x108] sm:$0xf]
          %v371 = vld [vmem:[#allocation2 + $0x10c] sm:$0xf]
          %v372 = vld [vmem:[#allocation2 + $0x110] sm:$0xf]
          %v373 = vld [vmem:[#allocation2 + $0x114] sm:$0xf]
          %v374 = vld [vmem:[#allocation2 + $0x118] sm:$0xf]
          %v375 = vld [vmem:[#allocation2 + $0x11c] sm:$0xf]
          %v376 = vld [vmem:[#allocation2 + $0x120] sm:$0xf]
          %v377 = vld [vmem:[#allocation2 + $0x124] sm:$0xf]
          %v378 = vld [vmem:[#allocation2 + $0x128] sm:$0xf]
          %v379 = vld [vmem:[#allocation2 + $0x12c] sm:$0xf]
          %v380 = vld [vmem:[#allocation2 + $0x130] sm:$0xf]
          %v381 = vld [vmem:[#allocation2 + $0x134] sm:$0xf]
          %v382 = vld [vmem:[#allocation2 + $0x138] sm:$0xf]
          %v383 = vld [vmem:[#allocation2 + $0x13c] sm:$0xf]
          %v384 = vld [vmem:[#allocation2 + $0x140] sm:$0xf]
          %v385 = vld [vmem:[#allocation2 + $0x144] sm:$0xf]
          %v386 = vld [vmem:[#allocation2 + $0x148] sm:$0xf]
          %v387 = vld [vmem:[#allocation2 + $0x14c] sm:$0xf]
          %v388 = vld [vmem:[#allocation2 + $0x150] sm:$0xf]
          %v389 = vld [vmem:[#allocation2 + $0x154] sm:$0xf]
          %v390 = vld [vmem:[#allocation2 + $0x158] sm:$0xf]
          %v391 = vld [vmem:[#allocation2 + $0x15c] sm:$0xf]
          %v392 = vld [vmem:[#allocation2 + $0x160] sm:$0xf]
          %v393 = vld [vmem:[#allocation2 + $0x164] sm:$0xf]
          %v394 = vld [vmem:[#allocation2 + $0x168] sm:$0xf]
          %v395 = vld [vmem:[#allocation2 + $0x16c] sm:$0xf]
          %v396 = vld [vmem:[#allocation2 + $0x170] sm:$0xf]
          %v397 = vld [vmem:[#allocation2 + $0x174] sm:$0xf]
          %v398 = vld [vmem:[#allocation2 + $0x178] sm:$0xf]
          %v399 = vld [vmem:[#allocation2 + $0x17c] sm:$0xf]
          %v400 = vld [vmem:[#allocation2 + $0x180] sm:$0xf]
          %v401 = vld [vmem:[#allocation2 + $0x184] sm:$0xf]
          %v402 = vld [vmem:[#allocation2 + $0x188] sm:$0xf]
          %v403 = vld [vmem:[#allocation2 + $0x18c] sm:$0xf]
          %v404 = vld [vmem:[#allocation2 + $0x190] sm:$0xf]
          %v405 = vld [vmem:[#allocation2 + $0x194] sm:$0xf]
          %v406 = vld [vmem:[#allocation2 + $0x198] sm:$0xf]
          %v407 = vld [vmem:[#allocation2 + $0x19c] sm:$0xf]
          %v408 = vld [vmem:[#allocation2 + $0x1a0] sm:$0xf]
          %v409 = vld [vmem:[#allocation2 + $0x1a4] sm:$0xf]
          %v410 = vld [vmem:[#allocation2 + $0x1a8] sm:$0xf]
          %v411 = vld [vmem:[#allocation2 + $0x1ac] sm:$0xf]
          %v412 = vld [vmem:[#allocation2 + $0x1b0] sm:$0xf]
          %v413 = vld [vmem:[#allocation2 + $0x1b4] sm:$0xf]
          %v414 = vld [vmem:[#allocation2 + $0x1b8] sm:$0xf]
          %v415 = vld [vmem:[#allocation2 + $0x1bc] sm:$0xf]
          %v416 = vld [vmem:[#allocation2 + $0x1c0] sm:$0xf]
          %v417 = vld [vmem:[#allocation2 + $0x1c4] sm:$0xf]
          %v418 = vld [vmem:[#allocation2 + $0x1c8] sm:$0xf]
          %v419 = vld [vmem:[#allocation2 + $0x1cc] sm:$0xf]
          %v420 = vld [vmem:[#allocation2 + $0x1d0] sm:$0xf]
          %v421 = vld [vmem:[#allocation2 + $0x1d4] sm:$0xf]
          %v422 = vld [vmem:[#allocation2 + $0x1d8] sm:$0xf]
          %v423 = vld [vmem:[#allocation2 + $0x1dc] sm:$0xf]
          %v424 = vld [vmem:[#allocation2 + $0x1e0] sm:$0xf]
          %v425 = vld [vmem:[#allocation2 + $0x1e4] sm:$0xf]
          %v426 = vld [vmem:[#allocation2 + $0x1e8] sm:$0xf]
          %v427 = vld [vmem:[#allocation2 + $0x1ec] sm:$0xf]
          %v428 = vld [vmem:[#allocation2 + $0x1f0] sm:$0xf]
          %v429 = vld [vmem:[#allocation2 + $0x1f4] sm:$0xf]
          %v430 = vld [vmem:[#allocation2 + $0x1f8] sm:$0xf]
          %v431 = vld [vmem:[#allocation2 + $0x1fc] sm:$0xf]
          %v432 = vld [vmem:[%s3] sm:$0x1]
          %v434 = vlaneseq
          %v435 = vshrl.u32 %v434, 7
          %v436 = vsub.s32 0, %v435
          %v437 = vrot.slane %v432, %v436
          %v567 = vunpack.c.l.b16 %v304
          %v568 = vunpack.c.l.b16 %v305
          %v569 = vunpack.c.l.b16 %v306
          %v570 = vunpack.c.l.b16 %v307
          %v571 = vunpack.c.l.b16 %v308
          %v572 = vunpack.c.l.b16 %v309
          %v573 = vunpack.c.l.b16 %v310
          %v574 = vunpack.c.l.b16 %v311
          %v575 = vunpack.c.l.b16 %v312
          %v576 = vunpack.c.l.b16 %v313
          %v577 = vunpack.c.l.b16 %v314
          %v578 = vunpack.c.l.b16 %v315
          %v579 = vunpack.c.l.b16 %v316
          %v580 = vunpack.c.l.b16 %v317
          %v581 = vunpack.c.l.b16 %v318
          %v582 = vunpack.c.l.b16 %v319
          %v583 = vunpack.c.l.b16 %v320
          %v584 = vunpack.c.l.b16 %v321
          %v585 = vunpack.c.l.b16 %v322
          %v586 = vunpack.c.l.b16 %v323
          %v587 = vunpack.c.l.b16 %v324
          %v588 = vunpack.c.l.b16 %v325
          %v589 = vunpack.c.l.b16 %v326
          %v590 = vunpack.c.l.b16 %v327
          %v591 = vunpack.c.l.b16 %v328
          %v592 = vunpack.c.l.b16 %v329
          %v593 = vunpack.c.l.b16 %v330
          %v594 = vunpack.c.l.b16 %v331
          %v595 = vunpack.c.l.b16 %v332
          %v596 = vunpack.c.l.b16 %v333
          %v597 = vunpack.c.l.b16 %v334
          %v598 = vunpack.c.l.b16 %v335
          %v599 = vunpack.c.l.b16 %v336
          %v600 = vunpack.c.l.b16 %v337
          %v601 = vunpack.c.l.b16 %v338
          %v602 = vunpack.c.l.b16 %v339
          %v603 = vunpack.c.l.b16 %v340
          %v604 = vunpack.c.l.b16 %v341
          %v605 = vunpack.c.l.b16 %v342
          %v606 = vunpack.c.l.b16 %v343
          %v607 = vunpack.c.l.b16 %v344
          %v608 = vunpack.c.l.b16 %v345
          %v609 = vunpack.c.l.b16 %v346
          %v610 = vunpack.c.l.b16 %v347
          %v611 = vunpack.c.l.b16 %v348
          %v612 = vunpack.c.l.b16 %v349
          %v613 = vunpack.c.l.b16 %v350
          %v614 = vunpack.c.l.b16 %v351
          %v615 = vunpack.c.l.b16 %v352
          %v616 = vunpack.c.l.b16 %v353
          %v617 = vunpack.c.l.b16 %v354
          %v618 = vunpack.c.l.b16 %v355
          %v619 = vunpack.c.l.b16 %v356
          %v620 = vunpack.c.l.b16 %v357
          %v621 = vunpack.c.l.b16 %v358
          %v622 = vunpack.c.l.b16 %v359
          %v623 = vunpack.c.l.b16 %v360
          %v624 = vunpack.c.l.b16 %v361
          %v625 = vunpack.c.l.b16 %v362
          %v626 = vunpack.c.l.b16 %v363
          %v627 = vunpack.c.l.b16 %v364
          %v628 = vunpack.c.l.b16 %v365
          %v629 = vunpack.c.l.b16 %v366
          %v630 = vunpack.c.l.b16 %v367
          %v631 = vunpack.c.l.b16 %v368
          %v632 = vunpack.c.l.b16 %v369
          %v633 = vunpack.c.l.b16 %v370
          %v634 = vunpack.c.l.b16 %v371
          %v635 = vunpack.c.l.b16 %v372
          %v636 = vunpack.c.l.b16 %v373
          %v637 = vunpack.c.l.b16 %v374
          %v638 = vunpack.c.l.b16 %v375
          %v639 = vunpack.c.l.b16 %v376
          %v640 = vunpack.c.l.b16 %v377
          %v641 = vunpack.c.l.b16 %v378
          %v642 = vunpack.c.l.b16 %v379
          %v643 = vunpack.c.l.b16 %v380
          %v644 = vunpack.c.l.b16 %v381
          %v645 = vunpack.c.l.b16 %v382
          %v646 = vunpack.c.l.b16 %v383
          %v647 = vunpack.c.l.b16 %v384
          %v648 = vunpack.c.l.b16 %v385
          %v649 = vunpack.c.l.b16 %v386
          %v650 = vunpack.c.l.b16 %v387
          %v651 = vunpack.c.l.b16 %v388
          %v652 = vunpack.c.l.b16 %v389
          %v653 = vunpack.c.l.b16 %v390
          %v654 = vunpack.c.l.b16 %v391
          %v655 = vunpack.c.l.b16 %v392
          %v656 = vunpack.c.l.b16 %v393
          %v657 = vunpack.c.l.b16 %v394
          %v658 = vunpack.c.l.b16 %v395
          %v659 = vunpack.c.l.b16 %v396
          %v660 = vunpack.c.l.b16 %v397
          %v661 = vunpack.c.l.b16 %v398
          %v662 = vunpack.c.l.b16 %v399
          %v663 = vunpack.c.l.b16 %v400
          %v664 = vunpack.c.l.b16 %v401
          %v665 = vunpack.c.l.b16 %v402
          %v666 = vunpack.c.l.b16 %v403
          %v667 = vunpack.c.l.b16 %v404
          %v668 = vunpack.c.l.b16 %v405
          %v669 = vunpack.c.l.b16 %v406
          %v670 = vunpack.c.l.b16 %v407
          %v671 = vunpack.c.l.b16 %v408
          %v672 = vunpack.c.l.b16 %v409
          %v673 = vunpack.c.l.b16 %v410
          %v674 = vunpack.c.l.b16 %v411
          %v675 = vunpack.c.l.b16 %v412
          %v676 = vunpack.c.l.b16 %v413
          %v677 = vunpack.c.l.b16 %v414
          %v678 = vunpack.c.l.b16 %v415
          %v679 = vunpack.c.l.b16 %v416
          %v680 = vunpack.c.l.b16 %v417
          %v681 = vunpack.c.l.b16 %v418
          %v682 = vunpack.c.l.b16 %v419
          %v683 = vunpack.c.l.b16 %v420
          %v684 = vunpack.c.l.b16 %v421
          %v685 = vunpack.c.l.b16 %v422
          %v686 = vunpack.c.l.b16 %v423
          %v687 = vunpack.c.l.b16 %v424
          %v688 = vunpack.c.l.b16 %v425
          %v689 = vunpack.c.l.b16 %v426
          %v690 = vunpack.c.l.b16 %v427
          %v691 = vunpack.c.l.b16 %v428
          %v692 = vunpack.c.l.b16 %v429
          %v693 = vunpack.c.l.b16 %v430
          %v694 = vunpack.c.l.b16 %v431
          %v695 = vpack.c.b16 %v568, %v567
          %v696 = vpack.c.b16 %v570, %v569
          %v697 = vpack.c.b16 %v572, %v571
          %v698 = vpack.c.b16 %v574, %v573
          %v699 = vpack.c.b16 %v576, %v575
          %v700 = vpack.c.b16 %v578, %v577
          %v701 = vpack.c.b16 %v580, %v579
          %v702 = vpack.c.b16 %v582, %v581
          %v703 = vpack.c.b16 %v584, %v583
          %v704 = vpack.c.b16 %v586, %v585
          %v705 = vpack.c.b16 %v588, %v587
          %v706 = vpack.c.b16 %v590, %v589
          %v707 = vpack.c.b16 %v592, %v591
          %v708 = vpack.c.b16 %v594, %v593
          %v709 = vpack.c.b16 %v596, %v595
          %v710 = vpack.c.b16 %v598, %v597
          %v711 = vpack.c.b16 %v600, %v599
          %v712 = vpack.c.b16 %v602, %v601
          %v713 = vpack.c.b16 %v604, %v603
          %v714 = vpack.c.b16 %v606, %v605
          %v715 = vpack.c.b16 %v608, %v607
          %v716 = vpack.c.b16 %v610, %v609
          %v717 = vpack.c.b16 %v612, %v611
          %v718 = vpack.c.b16 %v614, %v613
          %v719 = vpack.c.b16 %v616, %v615
          %v720 = vpack.c.b16 %v618, %v617
          %v721 = vpack.c.b16 %v620, %v619
          %v722 = vpack.c.b16 %v622, %v621
          %v723 = vpack.c.b16 %v624, %v623
          %v724 = vpack.c.b16 %v626, %v625
          %v725 = vpack.c.b16 %v628, %v627
          %v726 = vpack.c.b16 %v630, %v629
          %v727 = vpack.c.b16 %v632, %v631
          %v728 = vpack.c.b16 %v634, %v633
          %v729 = vpack.c.b16 %v636, %v635
          %v730 = vpack.c.b16 %v638, %v637
          %v731 = vpack.c.b16 %v640, %v639
          %v732 = vpack.c.b16 %v642, %v641
          %v733 = vpack.c.b16 %v644, %v643
          %v734 = vpack.c.b16 %v646, %v645
          %v735 = vpack.c.b16 %v648, %v647
          %v736 = vpack.c.b16 %v650, %v649
          %v737 = vpack.c.b16 %v652, %v651
          %v738 = vpack.c.b16 %v654, %v653
          %v739 = vpack.c.b16 %v656, %v655
          %v740 = vpack.c.b16 %v658, %v657
          %v741 = vpack.c.b16 %v660, %v659
          %v742 = vpack.c.b16 %v662, %v661
          %v743 = vpack.c.b16 %v664, %v663
          %v744 = vpack.c.b16 %v666, %v665
          %v745 = vpack.c.b16 %v668, %v667
          %v746 = vpack.c.b16 %v670, %v669
          %v747 = vpack.c.b16 %v672, %v671
          %v748 = vpack.c.b16 %v674, %v673
          %v749 = vpack.c.b16 %v676, %v675
          %v750 = vpack.c.b16 %v678, %v677
          %v751 = vpack.c.b16 %v680, %v679
          %v752 = vpack.c.b16 %v682, %v681
          %v753 = vpack.c.b16 %v684, %v683
          %v754 = vpack.c.b16 %v686, %v685
          %v755 = vpack.c.b16 %v688, %v687
          %v756 = vpack.c.b16 %v690, %v689
          %v757 = vpack.c.b16 %v692, %v691
          %v758 = vpack.c.b16 %v694, %v693
          %823 = vmatprep.subr.bf16.mxu0 0
          %824 = vmatpush1.bf16.msra.mxu0 %v702
          %825 = vmatprep.subr.bf16.mxu0 0
          %826 = vmatpush1.bf16.msra.mxu0 %v701
          %827 = vmatprep.subr.bf16.mxu0 0
          %828 = vmatpush1.bf16.msra.mxu0 %v700
          %829 = vmatprep.subr.bf16.mxu0 0
          %830 = vmatpush1.bf16.msra.mxu0 %v699
          %831 = vmatprep.subr.bf16.mxu0 0
          %832 = vmatpush1.bf16.msra.mxu0 %v698
          %833 = vmatprep.subr.bf16.mxu0 0
          %834 = vmatpush1.bf16.msra.mxu0 %v697
          %835 = vmatprep.subr.bf16.mxu0 0
          %836 = vmatpush1.bf16.msra.mxu0 %v696
          %837 = vmatprep.subr.bf16.mxu0 0
          %838 = vmatpush1.bf16.msra.mxu0 %v695
          %839 = vmatprep.subr.bf16.mxu0 0
          %840 = vmatpush2.bf16.msra.mxu0 %v710
          %841 = vmatprep.subr.bf16.mxu0 0
          %842 = vmatpush2.bf16.msra.mxu0 %v709
          %843 = vmatprep.subr.bf16.mxu0 0
          %844 = vmatpush2.bf16.msra.mxu0 %v708
          %845 = vmatprep.subr.bf16.mxu0 0
          %846 = vmatpush2.bf16.msra.mxu0 %v707
          %847 = vmatprep.subr.bf16.mxu0 0
          %848 = vmatpush2.bf16.msra.mxu0 %v706
          %849 = vmatprep.subr.bf16.mxu0 0
          %850 = vmatpush2.bf16.msra.mxu0 %v705
          %851 = vmatprep.subr.bf16.mxu0 0
          %852 = vmatpush2.bf16.msra.mxu0 %v704
          %853 = vmatprep.subr.bf16.mxu0 0
          %854 = vmatpush2.bf16.msra.mxu0 %v703
          %855 = vmatprep.mubr.bf16.mxu0 %v297
          %856 = vmatmul.mubr.bf16.gmra.mxu0 %v296
          %v857 = vpop.f32.mrf.mxu0
          %v858 = vadd.f32 %v437, %v857
          %v859 = vpop.f32.mrf.mxu0
          %v860 = vpop.f32.mrf.mxu0
          %v861 = vpop.f32.mrf.mxu0
          %862 = vdwg.mxu0
          %863 = vmatprep.subr.bf16.mxu0 0
          %864 = vmatpush1.bf16.msra.mxu0 %v718
          %865 = vmatprep.subr.bf16.mxu0 0
          %866 = vmatpush1.bf16.msra.mxu0 %v717
          %867 = vmatprep.subr.bf16.mxu0 0
          %868 = vmatpush1.bf16.msra.mxu0 %v716
          %869 = vmatprep.subr.bf16.mxu0 0
          %870 = vmatpush1.bf16.msra.mxu0 %v715
          %871 = vmatprep.subr.bf16.mxu0 0
          %872 = vmatpush1.bf16.msra.mxu0 %v714
          %873 = vmatprep.subr.bf16.mxu0 0
          %874 = vmatpush1.bf16.msra.mxu0 %v713
          %875 = vmatprep.subr.bf16.mxu0 0
          %876 = vmatpush1.bf16.msra.mxu0 %v712
          %877 = vmatprep.subr.bf16.mxu0 0
          %878 = vmatpush1.bf16.msra.mxu0 %v711
          %879 = vmatprep.subr.bf16.mxu0 0
          %880 = vmatpush2.bf16.msra.mxu0 %v726
          %881 = vmatprep.subr.bf16.mxu0 0
          %882 = vmatpush2.bf16.msra.mxu0 %v725
          %883 = vmatprep.subr.bf16.mxu0 0
          %884 = vmatpush2.bf16.msra.mxu0 %v724
          %885 = vmatprep.subr.bf16.mxu0 0
          %886 = vmatpush2.bf16.msra.mxu0 %v723
          %887 = vmatprep.subr.bf16.mxu0 0
          %888 = vmatpush2.bf16.msra.mxu0 %v722
          %889 = vmatprep.subr.bf16.mxu0 0
          %890 = vmatpush2.bf16.msra.mxu0 %v721
          %891 = vmatprep.subr.bf16.mxu0 0
          %892 = vmatpush2.bf16.msra.mxu0 %v720
          %893 = vmatprep.subr.bf16.mxu0 0
          %894 = vmatpush2.bf16.msra.mxu0 %v719
          %895 = vmatprep.mubr.bf16.mxu0 %v299
          %896 = vmatmul.mubr.bf16.gmra.mxu0 %v298
          %v897 = vpop.f32.mrf.mxu0
          %v898 = vadd.f32 %v858, %v897
          %v899 = vpop.f32.mrf.mxu0
          %v900 = vpop.f32.mrf.mxu0
          %v901 = vpop.f32.mrf.mxu0
          %902 = vdwg.mxu0
          %903 = vmatprep.subr.bf16.mxu0 0
          %904 = vmatpush1.bf16.msra.mxu0 %v734
          %905 = vmatprep.subr.bf16.mxu0 0
          %906 = vmatpush1.bf16.msra.mxu0 %v733
          %907 = vmatprep.subr.bf16.mxu0 0
          %908 = vmatpush1.bf16.msra.mxu0 %v732
          %909 = vmatprep.subr.bf16.mxu0 0
          %910 = vmatpush1.bf16.msra.mxu0 %v731
          %911 = vmatprep.subr.bf16.mxu0 0
          %912 = vmatpush1.bf16.msra.mxu0 %v730
          %913 = vmatprep.subr.bf16.mxu0 0
          %914 = vmatpush1.bf16.msra.mxu0 %v729
          %915 = vmatprep.subr.bf16.mxu0 0
          %916 = vmatpush1.bf16.msra.mxu0 %v728
          %917 = vmatprep.subr.bf16.mxu0 0
          %918 = vmatpush1.bf16.msra.mxu0 %v727
          %919 = vmatprep.subr.bf16.mxu0 0
          %920 = vmatpush2.bf16.msra.mxu0 %v742
          %921 = vmatprep.subr.bf16.mxu0 0
          %922 = vmatpush2.bf16.msra.mxu0 %v741
          %923 = vmatprep.subr.bf16.mxu0 0
          %924 = vmatpush2.bf16.msra.mxu0 %v740
          %925 = vmatprep.subr.bf16.mxu0 0
          %926 = vmatpush2.bf16.msra.mxu0 %v739
          %927 = vmatprep.subr.bf16.mxu0 0
          %928 = vmatpush2.bf16.msra.mxu0 %v738
          %929 = vmatprep.subr.bf16.mxu0 0
          %930 = vmatpush2.bf16.msra.mxu0 %v737
          %931 = vmatprep.subr.bf16.mxu0 0
          %932 = vmatpush2.bf16.msra.mxu0 %v736
          %933 = vmatprep.subr.bf16.mxu0 0
          %934 = vmatpush2.bf16.msra.mxu0 %v735
          %935 = vmatprep.mubr.bf16.mxu0 %v301
          %936 = vmatmul.mubr.bf16.gmra.mxu0 %v300
          %v937 = vpop.f32.mrf.mxu0
          %v938 = vadd.f32 %v898, %v937
          %v939 = vpop.f32.mrf.mxu0
          %v940 = vpop.f32.mrf.mxu0
          %v941 = vpop.f32.mrf.mxu0
          %942 = vdwg.mxu0
          %943 = vmatprep.subr.bf16.mxu0 0
          %944 = vmatpush1.bf16.msra.mxu0 %v750
          %945 = vmatprep.subr.bf16.mxu0 0
          %946 = vmatpush1.bf16.msra.mxu0 %v749
          %947 = vmatprep.subr.bf16.mxu0 0
          %948 = vmatpush1.bf16.msra.mxu0 %v748
          %949 = vmatprep.subr.bf16.mxu0 0
          %950 = vmatpush1.bf16.msra.mxu0 %v747
          %951 = vmatprep.subr.bf16.mxu0 0
          %952 = vmatpush1.bf16.msra.mxu0 %v746
          %953 = vmatprep.subr.bf16.mxu0 0
          %954 = vmatpush1.bf16.msra.mxu0 %v745
          %955 = vmatprep.subr.bf16.mxu0 0
          %956 = vmatpush1.bf16.msra.mxu0 %v744
          %957 = vmatprep.subr.bf16.mxu0 0
          %958 = vmatpush1.bf16.msra.mxu0 %v743
          %959 = vmatprep.subr.bf16.mxu0 0
          %960 = vmatpush2.bf16.msra.mxu0 %v758
          %961 = vmatprep.subr.bf16.mxu0 0
          %962 = vmatpush2.bf16.msra.mxu0 %v757
          %963 = vmatprep.subr.bf16.mxu0 0
          %964 = vmatpush2.bf16.msra.mxu0 %v756
          %965 = vmatprep.subr.bf16.mxu0 0
          %966 = vmatpush2.bf16.msra.mxu0 %v755
          %967 = vmatprep.subr.bf16.mxu0 0
          %968 = vmatpush2.bf16.msra.mxu0 %v754
          %969 = vmatprep.subr.bf16.mxu0 0
          %970 = vmatpush2.bf16.msra.mxu0 %v753
          %971 = vmatprep.subr.bf16.mxu0 0
          %972 = vmatpush2.bf16.msra.mxu0 %v752
          %973 = vmatprep.subr.bf16.mxu0 0
          %974 = vmatpush2.bf16.msra.mxu0 %v751
          %975 = vmatprep.mubr.bf16.mxu0 %v303
          %976 = vmatmul.mubr.bf16.gmra.mxu0 %v302
          %v977 = vpop.f32.mrf.mxu0
          %v978 = vadd.f32 %v938, %v977
          %v979 = vpop.f32.mrf.mxu0
          %v980 = vpop.f32.mrf.mxu0
          %v981 = vpop.f32.mrf.mxu0
          %982 = vdwg.mxu0
          %v983 = vmax.f32 %v978, 0.0
          %v984 = vpack.c.bf16 %v983, %v983
          %v985 = vld [vmem:[%s4] sm:$0xf]
          %v986 = vld [vmem:[%s4 + $0x4] sm:$0xf]
          %v987 = vld [vmem:[%s4 + $0x8] sm:$0xf]
          %v988 = vld [vmem:[%s4 + $0xc] sm:$0xf]
          %v989 = vld [vmem:[%s4 + $0x10] sm:$0xf]
          %v990 = vld [vmem:[%s4 + $0x14] sm:$0xf]
          %v991 = vld [vmem:[%s4 + $0x18] sm:$0xf]
          %v992 = vld [vmem:[%s4 + $0x1c] sm:$0xf]
          %v993 = vld [vmem:[%s4 + $0x20] sm:$0xf]
          %v994 = vld [vmem:[%s4 + $0x24] sm:$0xf]
          %v995 = vld [vmem:[%s4 + $0x28] sm:$0xf]
          %v996 = vld [vmem:[%s4 + $0x2c] sm:$0xf]
          %v997 = vld [vmem:[%s4 + $0x30] sm:$0xf]
          %v998 = vld [vmem:[%s4 + $0x34] sm:$0xf]
          %v999 = vld [vmem:[%s4 + $0x38] sm:$0xf]
          %v1000 = vld [vmem:[%s4 + $0x3c] sm:$0xf]
          %v1001 = vld [vmem:[%s5] sm:$0x1]
          %v1003 = vlaneseq
          %v1004 = vshrl.u32 %v1003, 7
          %v1005 = vsub.s32 0, %v1004
          %v1006 = vrot.slane %v1001, %v1005
          %v1024 = vunpack.c.l.b16 %v985
          %v1025 = vunpack.c.l.b16 %v986
          %v1026 = vunpack.c.l.b16 %v987
          %v1027 = vunpack.c.l.b16 %v988
          %v1028 = vunpack.c.l.b16 %v989
          %v1029 = vunpack.c.l.b16 %v990
          %v1030 = vunpack.c.l.b16 %v991
          %v1031 = vunpack.c.l.b16 %v992
          %v1032 = vunpack.c.l.b16 %v993
          %v1033 = vunpack.c.l.b16 %v994
          %v1034 = vunpack.c.l.b16 %v995
          %v1035 = vunpack.c.l.b16 %v996
          %v1036 = vunpack.c.l.b16 %v997
          %v1037 = vunpack.c.l.b16 %v998
          %v1038 = vunpack.c.l.b16 %v999
          %v1039 = vunpack.c.l.b16 %v1000
          %v1040 = vpack.c.b16 %v1025, %v1024
          %v1041 = vpack.c.b16 %v1027, %v1026
          %v1042 = vpack.c.b16 %v1029, %v1028
          %v1043 = vpack.c.b16 %v1031, %v1030
          %v1044 = vpack.c.b16 %v1033, %v1032
          %v1045 = vpack.c.b16 %v1035, %v1034
          %v1046 = vpack.c.b16 %v1037, %v1036
          %v1047 = vpack.c.b16 %v1039, %v1038
          %1056 = vmatprep.subr.bf16.mxu0 0
          %1057 = vmatpush1.bf16.msra.mxu0 %v1047
          %1058 = vmatprep.subr.bf16.mxu0 0
          %1059 = vmatpush1.bf16.msra.mxu0 %v1046
          %1060 = vmatprep.subr.bf16.mxu0 0
          %1061 = vmatpush1.bf16.msra.mxu0 %v1045
          %1062 = vmatprep.subr.bf16.mxu0 0
          %1063 = vmatpush1.bf16.msra.mxu0 %v1044
          %1064 = vmatprep.subr.bf16.mxu0 0
          %1065 = vmatpush1.bf16.msra.mxu0 %v1043
          %1066 = vmatprep.subr.bf16.mxu0 0
          %1067 = vmatpush1.bf16.msra.mxu0 %v1042
          %1068 = vmatprep.subr.bf16.mxu0 0
          %1069 = vmatpush1.bf16.msra.mxu0 %v1041
          %1070 = vmatprep.subr.bf16.mxu0 0
          %1071 = vmatpush1.bf16.msra.mxu0 %v1040
          %1072 = vmatprep.subr.bf16.mxu0 0
          %1073 = vmatpush2.bf16.msra.mxu0 0
          %1074 = vmatprep.subr.bf16.mxu0 0
          %1075 = vmatpush2.bf16.msra.mxu0 0
          %1076 = vmatprep.subr.bf16.mxu0 0
          %1077 = vmatpush2.bf16.msra.mxu0 0
          %1078 = vmatprep.subr.bf16.mxu0 0
          %1079 = vmatpush2.bf16.msra.mxu0 0
          %1080 = vmatprep.subr.bf16.mxu0 0
          %1081 = vmatpush2.bf16.msra.mxu0 0
          %1082 = vmatprep.subr.bf16.mxu0 0
          %1083 = vmatpush2.bf16.msra.mxu0 0
          %1084 = vmatprep.subr.bf16.mxu0 0
          %1085 = vmatpush2.bf16.msra.mxu0 0
          %1086 = vmatprep.subr.bf16.mxu0 0
          %1087 = vmatpush2.bf16.msra.mxu0 0
          %1088 = vmatprep.mubr.bf16.mxu0 0
          %1089 = vmatmul.mubr.bf16.gmra.mxu0 %v984
          %v1090 = vpop.f32.mrf.mxu0
          %v1091 = vadd.f32 %v1006, %v1090
          %v1092 = vpop.f32.mrf.mxu0
          %v1093 = vpop.f32.mrf.mxu0
          %v1094 = vpop.f32.mrf.mxu0
          %1095 = vdwg.mxu0
          %vm1096 = vcmask 254976
          %1097 = vst.msk [vmem:[%s244] sm:$0x3] %vm1096, %v1091
        $region52: #{siamese_forward.1} parent=43 // pred_fallthru
          _
        %p1098 = scmp.ne.s32.totalorder %s18, 0
        // Predicated region
        $region53: #{siamese_forward.1} parent=43 // pred_check
          %p1099 = pneg %p1098
        $region54: #{siamese_forward.1} parent=43 // pred_check_branch
          %1101 = sbr.rel (%p1099) target = $region56
        $region55: #{siamese_forward.1} parent=43 // pred_region
          %v1102 = vld [vmem:[%s1] sm:$0xff]
          %v1103 = vld [vmem:[%s1 + $0x8] sm:$0xff]
          %v1106 = vcombine.high %v1102, %v1102
          %v1108 = vunpack.c.l.s4 1983009808
          %v1109 = vunpack.c.0.s8 %v1108
          %v1110 = vlaneseq
          %v1111 = vshrl.u32 %v1110, 7
          %v1112 = vsub.s32 %v1109, %v1111
          %v1113 = vrot.slane %v1102, %v1112
          %v1115 = vunpack.c.l.s4 1983009808
          %v1116 = vunpack.c.0.s8 %v1115
          %v1117 = vlaneseq
          %v1118 = vshrl.u32 %v1117, 7
          %v1119 = vsub.s32 %v1116, %v1118
          %v1120 = vrot.slane %v1106, %v1119
          %v1121 = vcombine.high %v1113, %v1113
          %v1122 = vcombine.high %v1120, %v1120
          %v1123 = vcombine.high %v1103, %v1103
          %v1125 = vunpack.c.l.s4 1983009808
          %v1126 = vunpack.c.0.s8 %v1125
          %v1127 = vlaneseq
          %v1128 = vshrl.u32 %v1127, 7
          %v1129 = vsub.s32 %v1126, %v1128
          %v1130 = vrot.slane %v1103, %v1129
          %v1132 = vunpack.c.l.s4 1983009808
          %v1133 = vunpack.c.0.s8 %v1132
          %v1134 = vlaneseq
          %v1135 = vshrl.u32 %v1134, 7
          %v1136 = vsub.s32 %v1133, %v1135
          %v1137 = vrot.slane %v1123, %v1136
          %v1138 = vcombine.high %v1130, %v1130
          %v1139 = vcombine.high %v1137, %v1137
          %v1148 = vpack.c.bf16 %v1113, %v1113
          %v1149 = vpack.c.bf16 %v1121, %v1121
          %v1150 = vpack.c.bf16 %v1120, %v1120
          %v1151 = vpack.c.bf16 %v1122, %v1122
          %v1152 = vpack.c.bf16 %v1130, %v1130
          %v1153 = vpack.c.bf16 %v1138, %v1138
          %v1154 = vpack.c.bf16 %v1137, %v1137
          %v1155 = vpack.c.bf16 %v1139, %v1139
          %v1156 = vld [vmem:[#allocation2] sm:$0xf]
          %v1157 = vld [vmem:[#allocation2 + $0x4] sm:$0xf]
          %v1158 = vld [vmem:[#allocation2 + $0x8] sm:$0xf]
          %v1159 = vld [vmem:[#allocation2 + $0xc] sm:$0xf]
          %v1160 = vld [vmem:[#allocation2 + $0x10] sm:$0xf]
          %v1161 = vld [vmem:[#allocation2 + $0x14] sm:$0xf]
          %v1162 = vld [vmem:[#allocation2 + $0x18] sm:$0xf]
          %v1163 = vld [vmem:[#allocation2 + $0x1c] sm:$0xf]
          %v1164 = vld [vmem:[#allocation2 + $0x20] sm:$0xf]
          %v1165 = vld [vmem:[#allocation2 + $0x24] sm:$0xf]
          %v1166 = vld [vmem:[#allocation2 + $0x28] sm:$0xf]
          %v1167 = vld [vmem:[#allocation2 + $0x2c] sm:$0xf]
          %v1168 = vld [vmem:[#allocation2 + $0x30] sm:$0xf]
          %v1169 = vld [vmem:[#allocation2 + $0x34] sm:$0xf]
          %v1170 = vld [vmem:[#allocation2 + $0x38] sm:$0xf]
          %v1171 = vld [vmem:[#allocation2 + $0x3c] sm:$0xf]
          %v1172 = vld [vmem:[#allocation2 + $0x40] sm:$0xf]
          %v1173 = vld [vmem:[#allocation2 + $0x44] sm:$0xf]
          %v1174 = vld [vmem:[#allocation2 + $0x48] sm:$0xf]
          %v1175 = vld [vmem:[#allocation2 + $0x4c] sm:$0xf]
          %v1176 = vld [vmem:[#allocation2 + $0x50] sm:$0xf]
          %v1177 = vld [vmem:[#allocation2 + $0x54] sm:$0xf]
          %v1178 = vld [vmem:[#allocation2 + $0x58] sm:$0xf]
          %v1179 = vld [vmem:[#allocation2 + $0x5c] sm:$0xf]
          %v1180 = vld [vmem:[#allocation2 + $0x60] sm:$0xf]
          %v1181 = vld [vmem:[#allocation2 + $0x64] sm:$0xf]
          %v1182 = vld [vmem:[#allocation2 + $0x68] sm:$0xf]
          %v1183 = vld [vmem:[#allocation2 + $0x6c] sm:$0xf]
          %v1184 = vld [vmem:[#allocation2 + $0x70] sm:$0xf]
          %v1185 = vld [vmem:[#allocation2 + $0x74] sm:$0xf]
          %v1186 = vld [vmem:[#allocation2 + $0x78] sm:$0xf]
          %v1187 = vld [vmem:[#allocation2 + $0x7c] sm:$0xf]
          %v1188 = vld [vmem:[#allocation2 + $0x80] sm:$0xf]
          %v1189 = vld [vmem:[#allocation2 + $0x84] sm:$0xf]
          %v1190 = vld [vmem:[#allocation2 + $0x88] sm:$0xf]
          %v1191 = vld [vmem:[#allocation2 + $0x8c] sm:$0xf]
          %v1192 = vld [vmem:[#allocation2 + $0x90] sm:$0xf]
          %v1193 = vld [vmem:[#allocation2 + $0x94] sm:$0xf]
          %v1194 = vld [vmem:[#allocation2 + $0x98] sm:$0xf]
          %v1195 = vld [vmem:[#allocation2 + $0x9c] sm:$0xf]
          %v1196 = vld [vmem:[#allocation2 + $0xa0] sm:$0xf]
          %v1197 = vld [vmem:[#allocation2 + $0xa4] sm:$0xf]
          %v1198 = vld [vmem:[#allocation2 + $0xa8] sm:$0xf]
          %v1199 = vld [vmem:[#allocation2 + $0xac] sm:$0xf]
          %v1200 = vld [vmem:[#allocation2 + $0xb0] sm:$0xf]
          %v1201 = vld [vmem:[#allocation2 + $0xb4] sm:$0xf]
          %v1202 = vld [vmem:[#allocation2 + $0xb8] sm:$0xf]
          %v1203 = vld [vmem:[#allocation2 + $0xbc] sm:$0xf]
          %v1204 = vld [vmem:[#allocation2 + $0xc0] sm:$0xf]
          %v1205 = vld [vmem:[#allocation2 + $0xc4] sm:$0xf]
          %v1206 = vld [vmem:[#allocation2 + $0xc8] sm:$0xf]
          %v1207 = vld [vmem:[#allocation2 + $0xcc] sm:$0xf]
          %v1208 = vld [vmem:[#allocation2 + $0xd0] sm:$0xf]
          %v1209 = vld [vmem:[#allocation2 + $0xd4] sm:$0xf]
          %v1210 = vld [vmem:[#allocation2 + $0xd8] sm:$0xf]
          %v1211 = vld [vmem:[#allocation2 + $0xdc] sm:$0xf]
          %v1212 = vld [vmem:[#allocation2 + $0xe0] sm:$0xf]
          %v1213 = vld [vmem:[#allocation2 + $0xe4] sm:$0xf]
          %v1214 = vld [vmem:[#allocation2 + $0xe8] sm:$0xf]
          %v1215 = vld [vmem:[#allocation2 + $0xec] sm:$0xf]
          %v1216 = vld [vmem:[#allocation2 + $0xf0] sm:$0xf]
          %v1217 = vld [vmem:[#allocation2 + $0xf4] sm:$0xf]
          %v1218 = vld [vmem:[#allocation2 + $0xf8] sm:$0xf]
          %v1219 = vld [vmem:[#allocation2 + $0xfc] sm:$0xf]
          %v1220 = vld [vmem:[#allocation2 + $0x100] sm:$0xf]
          %v1221 = vld [vmem:[#allocation2 + $0x104] sm:$0xf]
          %v1222 = vld [vmem:[#allocation2 + $0x108] sm:$0xf]
          %v1223 = vld [vmem:[#allocation2 + $0x10c] sm:$0xf]
          %v1224 = vld [vmem:[#allocation2 + $0x110] sm:$0xf]
          %v1225 = vld [vmem:[#allocation2 + $0x114] sm:$0xf]
          %v1226 = vld [vmem:[#allocation2 + $0x118] sm:$0xf]
          %v1227 = vld [vmem:[#allocation2 + $0x11c] sm:$0xf]
          %v1228 = vld [vmem:[#allocation2 + $0x120] sm:$0xf]
          %v1229 = vld [vmem:[#allocation2 + $0x124] sm:$0xf]
          %v1230 = vld [vmem:[#allocation2 + $0x128] sm:$0xf]
          %v1231 = vld [vmem:[#allocation2 + $0x12c] sm:$0xf]
          %v1232 = vld [vmem:[#allocation2 + $0x130] sm:$0xf]
          %v1233 = vld [vmem:[#allocation2 + $0x134] sm:$0xf]
          %v1234 = vld [vmem:[#allocation2 + $0x138] sm:$0xf]
          %v1235 = vld [vmem:[#allocation2 + $0x13c] sm:$0xf]
          %v1236 = vld [vmem:[#allocation2 + $0x140] sm:$0xf]
          %v1237 = vld [vmem:[#allocation2 + $0x144] sm:$0xf]
          %v1238 = vld [vmem:[#allocation2 + $0x148] sm:$0xf]
          %v1239 = vld [vmem:[#allocation2 + $0x14c] sm:$0xf]
          %v1240 = vld [vmem:[#allocation2 + $0x150] sm:$0xf]
          %v1241 = vld [vmem:[#allocation2 + $0x154] sm:$0xf]
          %v1242 = vld [vmem:[#allocation2 + $0x158] sm:$0xf]
          %v1243 = vld [vmem:[#allocation2 + $0x15c] sm:$0xf]
          %v1244 = vld [vmem:[#allocation2 + $0x160] sm:$0xf]
          %v1245 = vld [vmem:[#allocation2 + $0x164] sm:$0xf]
          %v1246 = vld [vmem:[#allocation2 + $0x168] sm:$0xf]
          %v1247 = vld [vmem:[#allocation2 + $0x16c] sm:$0xf]
          %v1248 = vld [vmem:[#allocation2 + $0x170] sm:$0xf]
          %v1249 = vld [vmem:[#allocation2 + $0x174] sm:$0xf]
          %v1250 = vld [vmem:[#allocation2 + $0x178] sm:$0xf]
          %v1251 = vld [vmem:[#allocation2 + $0x17c] sm:$0xf]
          %v1252 = vld [vmem:[#allocation2 + $0x180] sm:$0xf]
          %v1253 = vld [vmem:[#allocation2 + $0x184] sm:$0xf]
          %v1254 = vld [vmem:[#allocation2 + $0x188] sm:$0xf]
          %v1255 = vld [vmem:[#allocation2 + $0x18c] sm:$0xf]
          %v1256 = vld [vmem:[#allocation2 + $0x190] sm:$0xf]
          %v1257 = vld [vmem:[#allocation2 + $0x194] sm:$0xf]
          %v1258 = vld [vmem:[#allocation2 + $0x198] sm:$0xf]
          %v1259 = vld [vmem:[#allocation2 + $0x19c] sm:$0xf]
          %v1260 = vld [vmem:[#allocation2 + $0x1a0] sm:$0xf]
          %v1261 = vld [vmem:[#allocation2 + $0x1a4] sm:$0xf]
          %v1262 = vld [vmem:[#allocation2 + $0x1a8] sm:$0xf]
          %v1263 = vld [vmem:[#allocation2 + $0x1ac] sm:$0xf]
          %v1264 = vld [vmem:[#allocation2 + $0x1b0] sm:$0xf]
          %v1265 = vld [vmem:[#allocation2 + $0x1b4] sm:$0xf]
          %v1266 = vld [vmem:[#allocation2 + $0x1b8] sm:$0xf]
          %v1267 = vld [vmem:[#allocation2 + $0x1bc] sm:$0xf]
          %v1268 = vld [vmem:[#allocation2 + $0x1c0] sm:$0xf]
          %v1269 = vld [vmem:[#allocation2 + $0x1c4] sm:$0xf]
          %v1270 = vld [vmem:[#allocation2 + $0x1c8] sm:$0xf]
          %v1271 = vld [vmem:[#allocation2 + $0x1cc] sm:$0xf]
          %v1272 = vld [vmem:[#allocation2 + $0x1d0] sm:$0xf]
          %v1273 = vld [vmem:[#allocation2 + $0x1d4] sm:$0xf]
          %v1274 = vld [vmem:[#allocation2 + $0x1d8] sm:$0xf]
          %v1275 = vld [vmem:[#allocation2 + $0x1dc] sm:$0xf]
          %v1276 = vld [vmem:[#allocation2 + $0x1e0] sm:$0xf]
          %v1277 = vld [vmem:[#allocation2 + $0x1e4] sm:$0xf]
          %v1278 = vld [vmem:[#allocation2 + $0x1e8] sm:$0xf]
          %v1279 = vld [vmem:[#allocation2 + $0x1ec] sm:$0xf]
          %v1280 = vld [vmem:[#allocation2 + $0x1f0] sm:$0xf]
          %v1281 = vld [vmem:[#allocation2 + $0x1f4] sm:$0xf]
          %v1282 = vld [vmem:[#allocation2 + $0x1f8] sm:$0xf]
          %v1283 = vld [vmem:[#allocation2 + $0x1fc] sm:$0xf]
          %v1284 = vld [vmem:[%s3] sm:$0x1]
          %v1286 = vlaneseq
          %v1287 = vshrl.u32 %v1286, 7
          %v1288 = vsub.s32 0, %v1287
          %v1289 = vrot.slane %v1284, %v1288
          %v1419 = vunpack.c.l.b16 %v1156
          %v1420 = vunpack.c.l.b16 %v1157
          %v1421 = vunpack.c.l.b16 %v1158
          %v1422 = vunpack.c.l.b16 %v1159
          %v1423 = vunpack.c.l.b16 %v1160
          %v1424 = vunpack.c.l.b16 %v1161
          %v1425 = vunpack.c.l.b16 %v1162
          %v1426 = vunpack.c.l.b16 %v1163
          %v1427 = vunpack.c.l.b16 %v1164
          %v1428 = vunpack.c.l.b16 %v1165
          %v1429 = vunpack.c.l.b16 %v1166
          %v1430 = vunpack.c.l.b16 %v1167
          %v1431 = vunpack.c.l.b16 %v1168
          %v1432 = vunpack.c.l.b16 %v1169
          %v1433 = vunpack.c.l.b16 %v1170
          %v1434 = vunpack.c.l.b16 %v1171
          %v1435 = vunpack.c.l.b16 %v1172
          %v1436 = vunpack.c.l.b16 %v1173
          %v1437 = vunpack.c.l.b16 %v1174
          %v1438 = vunpack.c.l.b16 %v1175
          %v1439 = vunpack.c.l.b16 %v1176
          %v1440 = vunpack.c.l.b16 %v1177
          %v1441 = vunpack.c.l.b16 %v1178
          %v1442 = vunpack.c.l.b16 %v1179
          %v1443 = vunpack.c.l.b16 %v1180
          %v1444 = vunpack.c.l.b16 %v1181
          %v1445 = vunpack.c.l.b16 %v1182
          %v1446 = vunpack.c.l.b16 %v1183
          %v1447 = vunpack.c.l.b16 %v1184
          %v1448 = vunpack.c.l.b16 %v1185
          %v1449 = vunpack.c.l.b16 %v1186
          %v1450 = vunpack.c.l.b16 %v1187
          %v1451 = vunpack.c.l.b16 %v1188
          %v1452 = vunpack.c.l.b16 %v1189
          %v1453 = vunpack.c.l.b16 %v1190
          %v1454 = vunpack.c.l.b16 %v1191
          %v1455 = vunpack.c.l.b16 %v1192
          %v1456 = vunpack.c.l.b16 %v1193
          %v1457 = vunpack.c.l.b16 %v1194
          %v1458 = vunpack.c.l.b16 %v1195
          %v1459 = vunpack.c.l.b16 %v1196
          %v1460 = vunpack.c.l.b16 %v1197
          %v1461 = vunpack.c.l.b16 %v1198
          %v1462 = vunpack.c.l.b16 %v1199
          %v1463 = vunpack.c.l.b16 %v1200
          %v1464 = vunpack.c.l.b16 %v1201
          %v1465 = vunpack.c.l.b16 %v1202
          %v1466 = vunpack.c.l.b16 %v1203
          %v1467 = vunpack.c.l.b16 %v1204
          %v1468 = vunpack.c.l.b16 %v1205
          %v1469 = vunpack.c.l.b16 %v1206
          %v1470 = vunpack.c.l.b16 %v1207
          %v1471 = vunpack.c.l.b16 %v1208
          %v1472 = vunpack.c.l.b16 %v1209
          %v1473 = vunpack.c.l.b16 %v1210
          %v1474 = vunpack.c.l.b16 %v1211
          %v1475 = vunpack.c.l.b16 %v1212
          %v1476 = vunpack.c.l.b16 %v1213
          %v1477 = vunpack.c.l.b16 %v1214
          %v1478 = vunpack.c.l.b16 %v1215
          %v1479 = vunpack.c.l.b16 %v1216
          %v1480 = vunpack.c.l.b16 %v1217
          %v1481 = vunpack.c.l.b16 %v1218
          %v1482 = vunpack.c.l.b16 %v1219
          %v1483 = vunpack.c.l.b16 %v1220
          %v1484 = vunpack.c.l.b16 %v1221
          %v1485 = vunpack.c.l.b16 %v1222
          %v1486 = vunpack.c.l.b16 %v1223
          %v1487 = vunpack.c.l.b16 %v1224
          %v1488 = vunpack.c.l.b16 %v1225
          %v1489 = vunpack.c.l.b16 %v1226
          %v1490 = vunpack.c.l.b16 %v1227
          %v1491 = vunpack.c.l.b16 %v1228
          %v1492 = vunpack.c.l.b16 %v1229
          %v1493 = vunpack.c.l.b16 %v1230
          %v1494 = vunpack.c.l.b16 %v1231
          %v1495 = vunpack.c.l.b16 %v1232
          %v1496 = vunpack.c.l.b16 %v1233
          %v1497 = vunpack.c.l.b16 %v1234
          %v1498 = vunpack.c.l.b16 %v1235
          %v1499 = vunpack.c.l.b16 %v1236
          %v1500 = vunpack.c.l.b16 %v1237
          %v1501 = vunpack.c.l.b16 %v1238
          %v1502 = vunpack.c.l.b16 %v1239
          %v1503 = vunpack.c.l.b16 %v1240
          %v1504 = vunpack.c.l.b16 %v1241
          %v1505 = vunpack.c.l.b16 %v1242
          %v1506 = vunpack.c.l.b16 %v1243
          %v1507 = vunpack.c.l.b16 %v1244
          %v1508 = vunpack.c.l.b16 %v1245
          %v1509 = vunpack.c.l.b16 %v1246
          %v1510 = vunpack.c.l.b16 %v1247
          %v1511 = vunpack.c.l.b16 %v1248
          %v1512 = vunpack.c.l.b16 %v1249
          %v1513 = vunpack.c.l.b16 %v1250
          %v1514 = vunpack.c.l.b16 %v1251
          %v1515 = vunpack.c.l.b16 %v1252
          %v1516 = vunpack.c.l.b16 %v1253
          %v1517 = vunpack.c.l.b16 %v1254
          %v1518 = vunpack.c.l.b16 %v1255
          %v1519 = vunpack.c.l.b16 %v1256
          %v1520 = vunpack.c.l.b16 %v1257
          %v1521 = vunpack.c.l.b16 %v1258
          %v1522 = vunpack.c.l.b16 %v1259
          %v1523 = vunpack.c.l.b16 %v1260
          %v1524 = vunpack.c.l.b16 %v1261
          %v1525 = vunpack.c.l.b16 %v1262
          %v1526 = vunpack.c.l.b16 %v1263
          %v1527 = vunpack.c.l.b16 %v1264
          %v1528 = vunpack.c.l.b16 %v1265
          %v1529 = vunpack.c.l.b16 %v1266
          %v1530 = vunpack.c.l.b16 %v1267
          %v1531 = vunpack.c.l.b16 %v1268
          %v1532 = vunpack.c.l.b16 %v1269
          %v1533 = vunpack.c.l.b16 %v1270
          %v1534 = vunpack.c.l.b16 %v1271
          %v1535 = vunpack.c.l.b16 %v1272
          %v1536 = vunpack.c.l.b16 %v1273
          %v1537 = vunpack.c.l.b16 %v1274
          %v1538 = vunpack.c.l.b16 %v1275
          %v1539 = vunpack.c.l.b16 %v1276
          %v1540 = vunpack.c.l.b16 %v1277
          %v1541 = vunpack.c.l.b16 %v1278
          %v1542 = vunpack.c.l.b16 %v1279
          %v1543 = vunpack.c.l.b16 %v1280
          %v1544 = vunpack.c.l.b16 %v1281
          %v1545 = vunpack.c.l.b16 %v1282
          %v1546 = vunpack.c.l.b16 %v1283
          %v1547 = vpack.c.b16 %v1420, %v1419
          %v1548 = vpack.c.b16 %v1422, %v1421
          %v1549 = vpack.c.b16 %v1424, %v1423
          %v1550 = vpack.c.b16 %v1426, %v1425
          %v1551 = vpack.c.b16 %v1428, %v1427
          %v1552 = vpack.c.b16 %v1430, %v1429
          %v1553 = vpack.c.b16 %v1432, %v1431
          %v1554 = vpack.c.b16 %v1434, %v1433
          %v1555 = vpack.c.b16 %v1436, %v1435
          %v1556 = vpack.c.b16 %v1438, %v1437
          %v1557 = vpack.c.b16 %v1440, %v1439
          %v1558 = vpack.c.b16 %v1442, %v1441
          %v1559 = vpack.c.b16 %v1444, %v1443
          %v1560 = vpack.c.b16 %v1446, %v1445
          %v1561 = vpack.c.b16 %v1448, %v1447
          %v1562 = vpack.c.b16 %v1450, %v1449
          %v1563 = vpack.c.b16 %v1452, %v1451
          %v1564 = vpack.c.b16 %v1454, %v1453
          %v1565 = vpack.c.b16 %v1456, %v1455
          %v1566 = vpack.c.b16 %v1458, %v1457
          %v1567 = vpack.c.b16 %v1460, %v1459
          %v1568 = vpack.c.b16 %v1462, %v1461
          %v1569 = vpack.c.b16 %v1464, %v1463
          %v1570 = vpack.c.b16 %v1466, %v1465
          %v1571 = vpack.c.b16 %v1468, %v1467
          %v1572 = vpack.c.b16 %v1470, %v1469
          %v1573 = vpack.c.b16 %v1472, %v1471
          %v1574 = vpack.c.b16 %v1474, %v1473
          %v1575 = vpack.c.b16 %v1476, %v1475
          %v1576 = vpack.c.b16 %v1478, %v1477
          %v1577 = vpack.c.b16 %v1480, %v1479
          %v1578 = vpack.c.b16 %v1482, %v1481
          %v1579 = vpack.c.b16 %v1484, %v1483
          %v1580 = vpack.c.b16 %v1486, %v1485
          %v1581 = vpack.c.b16 %v1488, %v1487
          %v1582 = vpack.c.b16 %v1490, %v1489
          %v1583 = vpack.c.b16 %v1492, %v1491
          %v1584 = vpack.c.b16 %v1494, %v1493
          %v1585 = vpack.c.b16 %v1496, %v1495
          %v1586 = vpack.c.b16 %v1498, %v1497
          %v1587 = vpack.c.b16 %v1500, %v1499
          %v1588 = vpack.c.b16 %v1502, %v1501
          %v1589 = vpack.c.b16 %v1504, %v1503
          %v1590 = vpack.c.b16 %v1506, %v1505
          %v1591 = vpack.c.b16 %v1508, %v1507
          %v1592 = vpack.c.b16 %v1510, %v1509
          %v1593 = vpack.c.b16 %v1512, %v1511
          %v1594 = vpack.c.b16 %v1514, %v1513
          %v1595 = vpack.c.b16 %v1516, %v1515
          %v1596 = vpack.c.b16 %v1518, %v1517
          %v1597 = vpack.c.b16 %v1520, %v1519
          %v1598 = vpack.c.b16 %v1522, %v1521
          %v1599 = vpack.c.b16 %v1524, %v1523
          %v1600 = vpack.c.b16 %v1526, %v1525
          %v1601 = vpack.c.b16 %v1528, %v1527
          %v1602 = vpack.c.b16 %v1530, %v1529
          %v1603 = vpack.c.b16 %v1532, %v1531
          %v1604 = vpack.c.b16 %v1534, %v1533
          %v1605 = vpack.c.b16 %v1536, %v1535
          %v1606 = vpack.c.b16 %v1538, %v1537
          %v1607 = vpack.c.b16 %v1540, %v1539
          %v1608 = vpack.c.b16 %v1542, %v1541
          %v1609 = vpack.c.b16 %v1544, %v1543
          %v1610 = vpack.c.b16 %v1546, %v1545
          %1675 = vmatprep.subr.bf16.mxu0 0
          %1676 = vmatpush1.bf16.msra.mxu0 %v1554
          %1677 = vmatprep.subr.bf16.mxu0 0
          %1678 = vmatpush1.bf16.msra.mxu0 %v1553
          %1679 = vmatprep.subr.bf16.mxu0 0
          %1680 = vmatpush1.bf16.msra.mxu0 %v1552
          %1681 = vmatprep.subr.bf16.mxu0 0
          %1682 = vmatpush1.bf16.msra.mxu0 %v1551
          %1683 = vmatprep.subr.bf16.mxu0 0
          %1684 = vmatpush1.bf16.msra.mxu0 %v1550
          %1685 = vmatprep.subr.bf16.mxu0 0
          %1686 = vmatpush1.bf16.msra.mxu0 %v1549
          %1687 = vmatprep.subr.bf16.mxu0 0
          %1688 = vmatpush1.bf16.msra.mxu0 %v1548
          %1689 = vmatprep.subr.bf16.mxu0 0
          %1690 = vmatpush1.bf16.msra.mxu0 %v1547
          %1691 = vmatprep.subr.bf16.mxu0 0
          %1692 = vmatpush2.bf16.msra.mxu0 %v1562
          %1693 = vmatprep.subr.bf16.mxu0 0
          %1694 = vmatpush2.bf16.msra.mxu0 %v1561
          %1695 = vmatprep.subr.bf16.mxu0 0
          %1696 = vmatpush2.bf16.msra.mxu0 %v1560
          %1697 = vmatprep.subr.bf16.mxu0 0
          %1698 = vmatpush2.bf16.msra.mxu0 %v1559
          %1699 = vmatprep.subr.bf16.mxu0 0
          %1700 = vmatpush2.bf16.msra.mxu0 %v1558
          %1701 = vmatprep.subr.bf16.mxu0 0
          %1702 = vmatpush2.bf16.msra.mxu0 %v1557
          %1703 = vmatprep.subr.bf16.mxu0 0
          %1704 = vmatpush2.bf16.msra.mxu0 %v1556
          %1705 = vmatprep.subr.bf16.mxu0 0
          %1706 = vmatpush2.bf16.msra.mxu0 %v1555
          %1707 = vmatprep.mubr.bf16.mxu0 %v1149
          %1708 = vmatmul.mubr.bf16.gmra.mxu0 %v1148
          %v1709 = vpop.f32.mrf.mxu0
          %v1710 = vadd.f32 %v1289, %v1709
          %v1711 = vpop.f32.mrf.mxu0
          %v1712 = vpop.f32.mrf.mxu0
          %v1713 = vpop.f32.mrf.mxu0
          %1714 = vdwg.mxu0
          %1715 = vmatprep.subr.bf16.mxu0 0
          %1716 = vmatpush1.bf16.msra.mxu0 %v1570
          %1717 = vmatprep.subr.bf16.mxu0 0
          %1718 = vmatpush1.bf16.msra.mxu0 %v1569
          %1719 = vmatprep.subr.bf16.mxu0 0
          %1720 = vmatpush1.bf16.msra.mxu0 %v1568
          %1721 = vmatprep.subr.bf16.mxu0 0
          %1722 = vmatpush1.bf16.msra.mxu0 %v1567
          %1723 = vmatprep.subr.bf16.mxu0 0
          %1724 = vmatpush1.bf16.msra.mxu0 %v1566
          %1725 = vmatprep.subr.bf16.mxu0 0
          %1726 = vmatpush1.bf16.msra.mxu0 %v1565
          %1727 = vmatprep.subr.bf16.mxu0 0
          %1728 = vmatpush1.bf16.msra.mxu0 %v1564
          %1729 = vmatprep.subr.bf16.mxu0 0
          %1730 = vmatpush1.bf16.msra.mxu0 %v1563
          %1731 = vmatprep.subr.bf16.mxu0 0
          %1732 = vmatpush2.bf16.msra.mxu0 %v1578
          %1733 = vmatprep.subr.bf16.mxu0 0
          %1734 = vmatpush2.bf16.msra.mxu0 %v1577
          %1735 = vmatprep.subr.bf16.mxu0 0
          %1736 = vmatpush2.bf16.msra.mxu0 %v1576
          %1737 = vmatprep.subr.bf16.mxu0 0
          %1738 = vmatpush2.bf16.msra.mxu0 %v1575
          %1739 = vmatprep.subr.bf16.mxu0 0
          %1740 = vmatpush2.bf16.msra.mxu0 %v1574
          %1741 = vmatprep.subr.bf16.mxu0 0
          %1742 = vmatpush2.bf16.msra.mxu0 %v1573
          %1743 = vmatprep.subr.bf16.mxu0 0
          %1744 = vmatpush2.bf16.msra.mxu0 %v1572
          %1745 = vmatprep.subr.bf16.mxu0 0
          %1746 = vmatpush2.bf16.msra.mxu0 %v1571
          %1747 = vmatprep.mubr.bf16.mxu0 %v1151
          %1748 = vmatmul.mubr.bf16.gmra.mxu0 %v1150
          %v1749 = vpop.f32.mrf.mxu0
          %v1750 = vadd.f32 %v1710, %v1749
          %v1751 = vpop.f32.mrf.mxu0
          %v1752 = vpop.f32.mrf.mxu0
          %v1753 = vpop.f32.mrf.mxu0
          %1754 = vdwg.mxu0
          %1755 = vmatprep.subr.bf16.mxu0 0
          %1756 = vmatpush1.bf16.msra.mxu0 %v1586
          %1757 = vmatprep.subr.bf16.mxu0 0
          %1758 = vmatpush1.bf16.msra.mxu0 %v1585
          %1759 = vmatprep.subr.bf16.mxu0 0
          %1760 = vmatpush1.bf16.msra.mxu0 %v1584
          %1761 = vmatprep.subr.bf16.mxu0 0
          %1762 = vmatpush1.bf16.msra.mxu0 %v1583
          %1763 = vmatprep.subr.bf16.mxu0 0
          %1764 = vmatpush1.bf16.msra.mxu0 %v1582
          %1765 = vmatprep.subr.bf16.mxu0 0
          %1766 = vmatpush1.bf16.msra.mxu0 %v1581
          %1767 = vmatprep.subr.bf16.mxu0 0
          %1768 = vmatpush1.bf16.msra.mxu0 %v1580
          %1769 = vmatprep.subr.bf16.mxu0 0
          %1770 = vmatpush1.bf16.msra.mxu0 %v1579
          %1771 = vmatprep.subr.bf16.mxu0 0
          %1772 = vmatpush2.bf16.msra.mxu0 %v1594
          %1773 = vmatprep.subr.bf16.mxu0 0
          %1774 = vmatpush2.bf16.msra.mxu0 %v1593
          %1775 = vmatprep.subr.bf16.mxu0 0
          %1776 = vmatpush2.bf16.msra.mxu0 %v1592
          %1777 = vmatprep.subr.bf16.mxu0 0
          %1778 = vmatpush2.bf16.msra.mxu0 %v1591
          %1779 = vmatprep.subr.bf16.mxu0 0
          %1780 = vmatpush2.bf16.msra.mxu0 %v1590
          %1781 = vmatprep.subr.bf16.mxu0 0
          %1782 = vmatpush2.bf16.msra.mxu0 %v1589
          %1783 = vmatprep.subr.bf16.mxu0 0
          %1784 = vmatpush2.bf16.msra.mxu0 %v1588
          %1785 = vmatprep.subr.bf16.mxu0 0
          %1786 = vmatpush2.bf16.msra.mxu0 %v1587
          %1787 = vmatprep.mubr.bf16.mxu0 %v1153
          %1788 = vmatmul.mubr.bf16.gmra.mxu0 %v1152
          %v1789 = vpop.f32.mrf.mxu0
          %v1790 = vadd.f32 %v1750, %v1789
          %v1791 = vpop.f32.mrf.mxu0
          %v1792 = vpop.f32.mrf.mxu0
          %v1793 = vpop.f32.mrf.mxu0
          %1794 = vdwg.mxu0
          %1795 = vmatprep.subr.bf16.mxu0 0
          %1796 = vmatpush1.bf16.msra.mxu0 %v1602
          %1797 = vmatprep.subr.bf16.mxu0 0
          %1798 = vmatpush1.bf16.msra.mxu0 %v1601
          %1799 = vmatprep.subr.bf16.mxu0 0
          %1800 = vmatpush1.bf16.msra.mxu0 %v1600
          %1801 = vmatprep.subr.bf16.mxu0 0
          %1802 = vmatpush1.bf16.msra.mxu0 %v1599
          %1803 = vmatprep.subr.bf16.mxu0 0
          %1804 = vmatpush1.bf16.msra.mxu0 %v1598
          %1805 = vmatprep.subr.bf16.mxu0 0
          %1806 = vmatpush1.bf16.msra.mxu0 %v1597
          %1807 = vmatprep.subr.bf16.mxu0 0
          %1808 = vmatpush1.bf16.msra.mxu0 %v1596
          %1809 = vmatprep.subr.bf16.mxu0 0
          %1810 = vmatpush1.bf16.msra.mxu0 %v1595
          %1811 = vmatprep.subr.bf16.mxu0 0
          %1812 = vmatpush2.bf16.msra.mxu0 %v1610
          %1813 = vmatprep.subr.bf16.mxu0 0
          %1814 = vmatpush2.bf16.msra.mxu0 %v1609
          %1815 = vmatprep.subr.bf16.mxu0 0
          %1816 = vmatpush2.bf16.msra.mxu0 %v1608
          %1817 = vmatprep.subr.bf16.mxu0 0
          %1818 = vmatpush2.bf16.msra.mxu0 %v1607
          %1819 = vmatprep.subr.bf16.mxu0 0
          %1820 = vmatpush2.bf16.msra.mxu0 %v1606
          %1821 = vmatprep.subr.bf16.mxu0 0
          %1822 = vmatpush2.bf16.msra.mxu0 %v1605
          %1823 = vmatprep.subr.bf16.mxu0 0
          %1824 = vmatpush2.bf16.msra.mxu0 %v1604
          %1825 = vmatprep.subr.bf16.mxu0 0
          %1826 = vmatpush2.bf16.msra.mxu0 %v1603
          %1827 = vmatprep.mubr.bf16.mxu0 %v1155
          %1828 = vmatmul.mubr.bf16.gmra.mxu0 %v1154
          %v1829 = vpop.f32.mrf.mxu0
          %v1830 = vadd.f32 %v1790, %v1829
          %v1831 = vpop.f32.mrf.mxu0
          %v1832 = vpop.f32.mrf.mxu0
          %v1833 = vpop.f32.mrf.mxu0
          %1834 = vdwg.mxu0
          %v1835 = vmax.f32 %v1830, 0.0
          %v1836 = vpack.c.bf16 %v1835, %v1835
          %v1837 = vld [vmem:[%s4] sm:$0xf]
          %v1838 = vld [vmem:[%s4 + $0x4] sm:$0xf]
          %v1839 = vld [vmem:[%s4 + $0x8] sm:$0xf]
          %v1840 = vld [vmem:[%s4 + $0xc] sm:$0xf]
          %v1841 = vld [vmem:[%s4 + $0x10] sm:$0xf]
          %v1842 = vld [vmem:[%s4 + $0x14] sm:$0xf]
          %v1843 = vld [vmem:[%s4 + $0x18] sm:$0xf]
          %v1844 = vld [vmem:[%s4 + $0x1c] sm:$0xf]
          %v1845 = vld [vmem:[%s4 + $0x20] sm:$0xf]
          %v1846 = vld [vmem:[%s4 + $0x24] sm:$0xf]
          %v1847 = vld [vmem:[%s4 + $0x28] sm:$0xf]
          %v1848 = vld [vmem:[%s4 + $0x2c] sm:$0xf]
          %v1849 = vld [vmem:[%s4 + $0x30] sm:$0xf]
          %v1850 = vld [vmem:[%s4 + $0x34] sm:$0xf]
          %v1851 = vld [vmem:[%s4 + $0x38] sm:$0xf]
          %v1852 = vld [vmem:[%s4 + $0x3c] sm:$0xf]
          %v1853 = vld [vmem:[%s5] sm:$0x1]
          %v1855 = vlaneseq
          %v1856 = vshrl.u32 %v1855, 7
          %v1857 = vsub.s32 0, %v1856
          %v1858 = vrot.slane %v1853, %v1857
          %v1876 = vunpack.c.l.b16 %v1837
          %v1877 = vunpack.c.l.b16 %v1838
          %v1878 = vunpack.c.l.b16 %v1839
          %v1879 = vunpack.c.l.b16 %v1840
          %v1880 = vunpack.c.l.b16 %v1841
          %v1881 = vunpack.c.l.b16 %v1842
          %v1882 = vunpack.c.l.b16 %v1843
          %v1883 = vunpack.c.l.b16 %v1844
          %v1884 = vunpack.c.l.b16 %v1845
          %v1885 = vunpack.c.l.b16 %v1846
          %v1886 = vunpack.c.l.b16 %v1847
          %v1887 = vunpack.c.l.b16 %v1848
          %v1888 = vunpack.c.l.b16 %v1849
          %v1889 = vunpack.c.l.b16 %v1850
          %v1890 = vunpack.c.l.b16 %v1851
          %v1891 = vunpack.c.l.b16 %v1852
          %v1892 = vpack.c.b16 %v1877, %v1876
          %v1893 = vpack.c.b16 %v1879, %v1878
          %v1894 = vpack.c.b16 %v1881, %v1880
          %v1895 = vpack.c.b16 %v1883, %v1882
          %v1896 = vpack.c.b16 %v1885, %v1884
          %v1897 = vpack.c.b16 %v1887, %v1886
          %v1898 = vpack.c.b16 %v1889, %v1888
          %v1899 = vpack.c.b16 %v1891, %v1890
          %1908 = vmatprep.subr.bf16.mxu0 0
          %1909 = vmatpush1.bf16.msra.mxu0 %v1899
          %1910 = vmatprep.subr.bf16.mxu0 0
          %1911 = vmatpush1.bf16.msra.mxu0 %v1898
          %1912 = vmatprep.subr.bf16.mxu0 0
          %1913 = vmatpush1.bf16.msra.mxu0 %v1897
          %1914 = vmatprep.subr.bf16.mxu0 0
          %1915 = vmatpush1.bf16.msra.mxu0 %v1896
          %1916 = vmatprep.subr.bf16.mxu0 0
          %1917 = vmatpush1.bf16.msra.mxu0 %v1895
          %1918 = vmatprep.subr.bf16.mxu0 0
          %1919 = vmatpush1.bf16.msra.mxu0 %v1894
          %1920 = vmatprep.subr.bf16.mxu0 0
          %1921 = vmatpush1.bf16.msra.mxu0 %v1893
          %1922 = vmatprep.subr.bf16.mxu0 0
          %1923 = vmatpush1.bf16.msra.mxu0 %v1892
          %1924 = vmatprep.subr.bf16.mxu0 0
          %1925 = vmatpush2.bf16.msra.mxu0 0
          %1926 = vmatprep.subr.bf16.mxu0 0
          %1927 = vmatpush2.bf16.msra.mxu0 0
          %1928 = vmatprep.subr.bf16.mxu0 0
          %1929 = vmatpush2.bf16.msra.mxu0 0
          %1930 = vmatprep.subr.bf16.mxu0 0
          %1931 = vmatpush2.bf16.msra.mxu0 0
          %1932 = vmatprep.subr.bf16.mxu0 0
          %1933 = vmatpush2.bf16.msra.mxu0 0
          %1934 = vmatprep.subr.bf16.mxu0 0
          %1935 = vmatpush2.bf16.msra.mxu0 0
          %1936 = vmatprep.subr.bf16.mxu0 0
          %1937 = vmatpush2.bf16.msra.mxu0 0
          %1938 = vmatprep.subr.bf16.mxu0 0
          %1939 = vmatpush2.bf16.msra.mxu0 0
          %1940 = vmatprep.mubr.bf16.mxu0 0
          %1941 = vmatmul.mubr.bf16.gmra.mxu0 %v1836
          %v1942 = vpop.f32.mrf.mxu0
          %v1943 = vadd.f32 %v1858, %v1942
          %v1944 = vpop.f32.mrf.mxu0
          %v1945 = vpop.f32.mrf.mxu0
          %v1946 = vpop.f32.mrf.mxu0
          %1947 = vdwg.mxu0
          %vm1948 = vcmask 254976
          %1949 = vst.msk [vmem:[%s244] sm:$0x3] %vm1948, %v1943
        $region56: #{siamese_forward.1} parent=43 // pred_fallthru
          _
        %p1950 = scmp.lt.s32.totalorder %s18, 1
        %s1951 = scalar_select %p1950, %s18, 1
        %s1952 = smul.addr %s1951, 2
        %s1953 = scalar_lea.vmem %s6, %s1952
        // Predicated region
        $region57: #{siamese_forward.1} parent=43 // pred_check
          %p1954 = pneg %p162
        $region58: #{siamese_forward.1} parent=43 // pred_check_branch
          %1956 = sbr.rel (%p1954) target = $region60
        $region59: #{siamese_forward.1} parent=43 // pred_region
          _
        $region60: #{siamese_forward.1} parent=43 // pred_fallthru
          _
      $region44: #{siamese_forward.1} parent=5 // pred_fallthru
        _
      %p1957 = scmp.le.s32.totalorder 2, %s13
      // Predicated region
      $region61: #{siamese_forward.1} parent=5 // pred_check
        %p1958 = pneg %p1957
      $region62: #{siamese_forward.1} parent=5 // pred_check_branch
        %1960 = sbr.rel (%p1958) target = $region64
      $region63: #{siamese_forward.1} parent=5 // pred_region
        %s1961 = ssub.s32 %s13, 2
        // Predicated region
        $region65: #{siamese_forward.1} parent=63 // pred_check
          %p1962 = pneg %p168
        $region66: #{siamese_forward.1} parent=63 // pred_check_branch
          %1964 = sbr.rel (%p1962) target = $region68
        $region67: #{siamese_forward.1} parent=63 // pred_region
          %p1965 = scmp.lt.s32.totalorder %s19, 1
          %s1966 = scalar_select %p1965, %s19, 1
          %s1967 = smul.addr %s1966, 2
          %s1968 = scalar_lea.vmem %s6, %s1967
        $region68: #{siamese_forward.1} parent=63 // pred_fallthru
          _
      $region64: #{siamese_forward.1} parent=5 // pred_fallthru
        _
    $region6: #{siamese_forward.1} parent=1 // loop_footer
      %s17 = sadd.s32 1, %s13
    $region7: #{siamese_forward.1} parent=1 // loop_footer_branch
      %12 = sbr.rel target = $region3
    $region8: #{siamese_forward.1} parent=1 // loop_exit
      _
    %1969 = vsyncpa [#allocation3], 1
    %s1970 = scalar_lea.sflag [#allocation3], 1
    %1971 = vsyncpa %s1970, 1

</llo_original>
